<compile_context>
chip_gen: v7x
topology: tpu7x:2x2x1
jax: 0.10.0
libtpu: 0.0.40
codegen_flags: <defaults>
</compile_context>

<pallas_src>
import jax
import jax.numpy as jnp
from jax.experimental import pallas as pl
from jax.experimental.pallas import tpu as pltpu

HIDDEN_SIZES = [32, 64, 128, 128, 128, 128]


def _mlp_kernel(x_ref, *refs):
    """x_ref: (F_in_pad, TB) bf16; refs = (w0, b0, ..., wL, bL, out_ref).

    w_i : (out_pad_i, in_pad_i) bf16  (PyTorch [out, in] layout, zero-padded)
    b_i : (out_pad_i, 1)        f32
    out_ref : (out_pad_L, TB)   f32   (row 0 is the real output)
    """
    out_ref = refs[-1]
    params = refs[:-1]
    n_layers = len(params) // 2

    h = x_ref[...]                                   # bf16 (in_pad, TB)
    for i in range(n_layers):
        w = params[2 * i][...]                       # bf16 (out_pad, in_pad)
        b = params[2 * i + 1][...]                   # f32  (out_pad, 1)
        acc = jnp.dot(w, h, preferred_element_type=jnp.float32) + b
        if i < n_layers - 1:
            # Hidden layer: ReLU, then re-quantize to bf16 for the next MXU pass.
            h = jnp.maximum(acc, 0.0).astype(jnp.bfloat16)
        else:
            # TODO(synk): nn.Dropout(p=0.2) before this layer is identity in
            # eval mode; train-mode stochastic dropout is not implemented here.
            out_ref[...] = acc.astype(out_ref.dtype)


def _round_up(n, m):
    return ((n + m - 1) // m) * m


def mlp_forward(x, weights, biases, *, block_batch=None):
    """Forward pass of the MLP.

    x:       [B, input_size] float32
    weights: list of [out_i, in_i] arrays (PyTorch nn.Linear layout)
    biases:  list of [out_i] arrays
    returns: [B, 1] float32
    """
    B, f_in = x.shape
    n_layers = len(weights)

    if block_batch is None:
        # Lane-aligned (multiple of 128) batch tile, capped so double-buffered
        # activation tiles stay far inside the scoped VMEM budget on all chips.
        block_batch = min(1024, max(128, pl.next_power_of_2(B)))
    num_tiles = pl.cdiv(B, block_batch)
    b_pad = num_tiles * block_batch

    # ---- Input: pad features to 128 lanes, transpose to (features, batch),
    #      cast to bf16 (halves activation DMA bytes). Padding rows/cols are 0.
    f_in_p = _round_up(f_in, 128)
    xt = jnp.zeros((f_in_p, b_pad), jnp.bfloat16)
    xt = xt.at[:f_in, :B].set(x.T.astype(jnp.bfloat16))

    # ---- Parameters: zero-pad to lane-aligned shapes, weights -> bf16,
    #      biases -> f32 columns.  Whole arrays, constant index maps => they
    #      are DMA'd once and stay resident in VMEM for the whole grid.
    params = []
    in_specs = [pl.BlockSpec((f_in_p, block_batch), lambda i: (0, i))]
    prev_p = f_in_p
    for li, (w, b) in enumerate(zip(weights, biases)):
        out_f, in_f = w.shape
        last = li == n_layers - 1
        # Hidden dims padded to 128 lanes; final out dim (=1) padded to 8
        # sublanes so the last matmul/store stay on the standard tiled path.
        out_p = _round_up(out_f, 8) if last else _round_up(out_f, 128)

        wp = jnp.zeros((out_p, prev_p), jnp.bfloat16)
        wp = wp.at[:out_f, :in_f].set(w.astype(jnp.bfloat16))
        bp = jnp.zeros((out_p, 1), jnp.float32)
        bp = bp.at[:out_f, 0].set(b.astype(jnp.float32))

        params.extend([wp, bp])
        in_specs.append(pl.BlockSpec((out_p, prev_p), lambda i: (0, 0)))
        in_specs.append(pl.BlockSpec((out_p, 1), lambda i: (0, 0)))
        prev_p = out_p

    out_rows = prev_p  # padded final out dim (8)
    out = pl.pallas_call(
        _mlp_kernel,
        out_shape=jax.ShapeDtypeStruct((out_rows, b_pad), jnp.float32),
        grid=(num_tiles,),
        in_specs=in_specs,
        out_specs=pl.BlockSpec((out_rows, block_batch), lambda i: (0, i)),
        compiler_params=pltpu.CompilerParams(
            dimension_semantics=("parallel",),
        ),
    )(xt, *params)

    # Row 0 holds the real 1-wide output; crop batch padding, restore (B, 1).
    return out[0, :B].reshape(B, 1)


def init_params(key, input_size, hidden_sizes):
    """Deterministic init mimicking nn.Linear's uniform(-1/sqrt(fan_in), +).

    Weights are produced in PyTorch nn.Linear layout: [out_features, in_features].
    """
    sizes = [input_size] + list(hidden_sizes) + [1]
    weights, biases = [], []
    for i in range(len(sizes) - 1):
        fan_in, fan_out = sizes[i], sizes[i + 1]
        key, kw, kb = jax.random.split(key, 3)
        bound = 1.0 / (fan_in ** 0.5)
        w = jax.random.uniform(kw, (fan_out, fan_in), jnp.float32, -bound, bound)
        b = jax.random.uniform(kb, (fan_out,), jnp.float32, -bound, bound)
        weights.append(w)
        biases.append(b)
    return weights, biases


def reference_forward(x, weights, biases):
    """Pure-JAX f32 reference with PyTorch semantics (eval-mode dropout)."""
    h = x
    for i, (w, b) in enumerate(zip(weights, biases)):
        h = h @ w.T + b
        if i < len(weights) - 1:
            h = jnp.maximum(h, 0.0)
    return h


if __name__ == "__main__":
    key = jax.random.PRNGKey(0)
    input_size = 16
    batch = 8

    kx, kp = jax.random.split(key)
    x = jax.random.normal(kx, (batch, input_size), jnp.float32)
    weights, biases = init_params(kp, input_size, HIDDEN_SIZES)

    out = mlp_forward(x, weights, biases)
    out = jax.block_until_ready(out)

    ref = reference_forward(x, weights, biases)
    assert out.shape == (batch, 1), out.shape
    # bf16 MXU operands with f32 accumulation: tolerance loosened vs f32 ref.
    assert jnp.allclose(out, ref, atol=2e-2, rtol=2e-2), (out, ref)

    print("KERNEL_OK")
</pallas_src>

<mosaic_0001>
module attributes {stable_mosaic.version = 11 : i64} {
  func.func @_mlp_kernel(%arg0: i32, %arg1: memref<128x128xbf16, #tpu.memory_space<vmem>>, %arg2: memref<128x128xbf16, #tpu.memory_space<vmem>>, %arg3: memref<128x1xf32, #tpu.memory_space<vmem>>, %arg4: memref<128x128xbf16, #tpu.memory_space<vmem>>, %arg5: memref<128x1xf32, #tpu.memory_space<vmem>>, %arg6: memref<128x128xbf16, #tpu.memory_space<vmem>>, %arg7: memref<128x1xf32, #tpu.memory_space<vmem>>, %arg8: memref<128x128xbf16, #tpu.memory_space<vmem>>, %arg9: memref<128x1xf32, #tpu.memory_space<vmem>>, %arg10: memref<128x128xbf16, #tpu.memory_space<vmem>>, %arg11: memref<128x1xf32, #tpu.memory_space<vmem>>, %arg12: memref<128x128xbf16, #tpu.memory_space<vmem>>, %arg13: memref<128x1xf32, #tpu.memory_space<vmem>>, %arg14: memref<8x128xbf16, #tpu.memory_space<vmem>>, %arg15: memref<8x1xf32, #tpu.memory_space<vmem>>, %arg16: memref<8x128xf32, #tpu.memory_space<vmem>>) attributes {dimension_semantics = [#tpu.dimension_semantics<parallel>], iteration_bounds = array<i64: 1>, scalar_prefetch = 0 : i64, scratch_operands = 0 : i64, tpu.core_type = #tpu.core_type<tc>, window_params = [{transform_indices = @transform_0, window_bounds = array<i64: 128, 128>}, {pipeline_mode = #tpu.pipeline_mode<synchronous>, transform_indices = @transform_1, window_bounds = array<i64: 128, 128>}, {pipeline_mode = #tpu.pipeline_mode<synchronous>, transform_indices = @transform_2, window_bounds = array<i64: 128, 1>}, {pipeline_mode = #tpu.pipeline_mode<synchronous>, transform_indices = @transform_3, window_bounds = array<i64: 128, 128>}, {pipeline_mode = #tpu.pipeline_mode<synchronous>, transform_indices = @transform_4, window_bounds = array<i64: 128, 1>}, {pipeline_mode = #tpu.pipeline_mode<synchronous>, transform_indices = @transform_5, window_bounds = array<i64: 128, 128>}, {pipeline_mode = #tpu.pipeline_mode<synchronous>, transform_indices = @transform_6, window_bounds = array<i64: 128, 1>}, {pipeline_mode = #tpu.pipeline_mode<synchronous>, transform_indices = @transform_7, window_bounds = array<i64: 128, 128>}, {pipeline_mode = #tpu.pipeline_mode<synchronous>, transform_indices = @transform_8, window_bounds = array<i64: 128, 1>}, {pipeline_mode = #tpu.pipeline_mode<synchronous>, transform_indices = @transform_9, window_bounds = array<i64: 128, 128>}, {pipeline_mode = #tpu.pipeline_mode<synchronous>, transform_indices = @transform_10, window_bounds = array<i64: 128, 1>}, {pipeline_mode = #tpu.pipeline_mode<synchronous>, transform_indices = @transform_11, window_bounds = array<i64: 128, 128>}, {pipeline_mode = #tpu.pipeline_mode<synchronous>, transform_indices = @transform_12, window_bounds = array<i64: 128, 1>}, {pipeline_mode = #tpu.pipeline_mode<synchronous>, transform_indices = @transform_13, window_bounds = array<i64: 8, 128>}, {pipeline_mode = #tpu.pipeline_mode<synchronous>, transform_indices = @transform_14, window_bounds = array<i64: 8, 1>}, {transform_indices = @transform_15, window_bounds = array<i64: 8, 128>}]} {
    %c0 = arith.constant 0 : index
    %c0_0 = arith.constant 0 : index
    %0 = vector.load %arg1[%c0, %c0_0] : memref<128x128xbf16, #tpu.memory_space<vmem>>, vector<128x128xbf16>
    %c0_1 = arith.constant 0 : index
    %c0_2 = arith.constant 0 : index
    %1 = vector.load %arg2[%c0_1, %c0_2] : memref<128x128xbf16, #tpu.memory_space<vmem>>, vector<128x128xbf16>
    %c0_3 = arith.constant 0 : index
    %c0_4 = arith.constant 0 : index
    %2 = vector.load %arg3[%c0_3, %c0_4] : memref<128x1xf32, #tpu.memory_space<vmem>>, vector<128x1xf32>
    %cst = arith.constant dense<0.000000e+00> : vector<128x128xf32>
    %3 = tpu.matmul %1, %0, %cst {dimension_numbers = #tpu.dot_dimension_numbers<[1], [0], [0], [1], [0, 0, 1, 1], [], []>} : vector<128x128xbf16>, vector<128x128xbf16>, vector<128x128xf32> -> vector<128x128xf32>
    %4 = vector.broadcast %2 : vector<128x1xf32> to vector<128x128xf32>
    %5 = arith.addf %3, %4 : vector<128x128xf32>
    %cst_5 = arith.constant 0.000000e+00 : f32
    %6 = vector.broadcast %cst_5 : f32 to vector<128x128xf32>
    %7 = arith.maximumf %5, %6 : vector<128x128xf32>
    %8 = arith.truncf %7 : vector<128x128xf32> to vector<128x128xbf16>
    %c0_6 = arith.constant 0 : index
    %c0_7 = arith.constant 0 : index
    %9 = vector.load %arg4[%c0_6, %c0_7] : memref<128x128xbf16, #tpu.memory_space<vmem>>, vector<128x128xbf16>
    %c0_8 = arith.constant 0 : index
    %c0_9 = arith.constant 0 : index
    %10 = vector.load %arg5[%c0_8, %c0_9] : memref<128x1xf32, #tpu.memory_space<vmem>>, vector<128x1xf32>
    %cst_10 = arith.constant dense<0.000000e+00> : vector<128x128xf32>
    %11 = tpu.matmul %9, %8, %cst_10 {dimension_numbers = #tpu.dot_dimension_numbers<[1], [0], [0], [1], [0, 0, 1, 1], [], []>} : vector<128x128xbf16>, vector<128x128xbf16>, vector<128x128xf32> -> vector<128x128xf32>
    %12 = vector.broadcast %10 : vector<128x1xf32> to vector<128x128xf32>
    %13 = arith.addf %11, %12 : vector<128x128xf32>
    %cst_11 = arith.constant 0.000000e+00 : f32
    %14 = vector.broadcast %cst_11 : f32 to vector<128x128xf32>
    %15 = arith.maximumf %13, %14 : vector<128x128xf32>
    %16 = arith.truncf %15 : vector<128x128xf32> to vector<128x128xbf16>
    %c0_12 = arith.constant 0 : index
    %c0_13 = arith.constant 0 : index
    %17 = vector.load %arg6[%c0_12, %c0_13] : memref<128x128xbf16, #tpu.memory_space<vmem>>, vector<128x128xbf16>
    %c0_14 = arith.constant 0 : index
    %c0_15 = arith.constant 0 : index
    %18 = vector.load %arg7[%c0_14, %c0_15] : memref<128x1xf32, #tpu.memory_space<vmem>>, vector<128x1xf32>
    %cst_16 = arith.constant dense<0.000000e+00> : vector<128x128xf32>
    %19 = tpu.matmul %17, %16, %cst_16 {dimension_numbers = #tpu.dot_dimension_numbers<[1], [0], [0], [1], [0, 0, 1, 1], [], []>} : vector<128x128xbf16>, vector<128x128xbf16>, vector<128x128xf32> -> vector<128x128xf32>
    %20 = vector.broadcast %18 : vector<128x1xf32> to vector<128x128xf32>
    %21 = arith.addf %19, %20 : vector<128x128xf32>
    %cst_17 = arith.constant 0.000000e+00 : f32
    %22 = vector.broadcast %cst_17 : f32 to vector<128x128xf32>
    %23 = arith.maximumf %21, %22 : vector<128x128xf32>
    %24 = arith.truncf %23 : vector<128x128xf32> to vector<128x128xbf16>
    %c0_18 = arith.constant 0 : index
    %c0_19 = arith.constant 0 : index
    %25 = vector.load %arg8[%c0_18, %c0_19] : memref<128x128xbf16, #tpu.memory_space<vmem>>, vector<128x128xbf16>
    %c0_20 = arith.constant 0 : index
    %c0_21 = arith.constant 0 : index
    %26 = vector.load %arg9[%c0_20, %c0_21] : memref<128x1xf32, #tpu.memory_space<vmem>>, vector<128x1xf32>
    %cst_22 = arith.constant dense<0.000000e+00> : vector<128x128xf32>
    %27 = tpu.matmul %25, %24, %cst_22 {dimension_numbers = #tpu.dot_dimension_numbers<[1], [0], [0], [1], [0, 0, 1, 1], [], []>} : vector<128x128xbf16>, vector<128x128xbf16>, vector<128x128xf32> -> vector<128x128xf32>
    %28 = vector.broadcast %26 : vector<128x1xf32> to vector<128x128xf32>
    %29 = arith.addf %27, %28 : vector<128x128xf32>
    %cst_23 = arith.constant 0.000000e+00 : f32
    %30 = vector.broadcast %cst_23 : f32 to vector<128x128xf32>
    %31 = arith.maximumf %29, %30 : vector<128x128xf32>
    %32 = arith.truncf %31 : vector<128x128xf32> to vector<128x128xbf16>
    %c0_24 = arith.constant 0 : index
    %c0_25 = arith.constant 0 : index
    %33 = vector.load %arg10[%c0_24, %c0_25] : memref<128x128xbf16, #tpu.memory_space<vmem>>, vector<128x128xbf16>
    %c0_26 = arith.constant 0 : index
    %c0_27 = arith.constant 0 : index
    %34 = vector.load %arg11[%c0_26, %c0_27] : memref<128x1xf32, #tpu.memory_space<vmem>>, vector<128x1xf32>
    %cst_28 = arith.constant dense<0.000000e+00> : vector<128x128xf32>
    %35 = tpu.matmul %33, %32, %cst_28 {dimension_numbers = #tpu.dot_dimension_numbers<[1], [0], [0], [1], [0, 0, 1, 1], [], []>} : vector<128x128xbf16>, vector<128x128xbf16>, vector<128x128xf32> -> vector<128x128xf32>
    %36 = vector.broadcast %34 : vector<128x1xf32> to vector<128x128xf32>
    %37 = arith.addf %35, %36 : vector<128x128xf32>
    %cst_29 = arith.constant 0.000000e+00 : f32
    %38 = vector.broadcast %cst_29 : f32 to vector<128x128xf32>
    %39 = arith.maximumf %37, %38 : vector<128x128xf32>
    %40 = arith.truncf %39 : vector<128x128xf32> to vector<128x128xbf16>
    %c0_30 = arith.constant 0 : index
    %c0_31 = arith.constant 0 : index
    %41 = vector.load %arg12[%c0_30, %c0_31] : memref<128x128xbf16, #tpu.memory_space<vmem>>, vector<128x128xbf16>
    %c0_32 = arith.constant 0 : index
    %c0_33 = arith.constant 0 : index
    %42 = vector.load %arg13[%c0_32, %c0_33] : memref<128x1xf32, #tpu.memory_space<vmem>>, vector<128x1xf32>
    %cst_34 = arith.constant dense<0.000000e+00> : vector<128x128xf32>
    %43 = tpu.matmul %41, %40, %cst_34 {dimension_numbers = #tpu.dot_dimension_numbers<[1], [0], [0], [1], [0, 0, 1, 1], [], []>} : vector<128x128xbf16>, vector<128x128xbf16>, vector<128x128xf32> -> vector<128x128xf32>
    %44 = vector.broadcast %42 : vector<128x1xf32> to vector<128x128xf32>
    %45 = arith.addf %43, %44 : vector<128x128xf32>
    %cst_35 = arith.constant 0.000000e+00 : f32
    %46 = vector.broadcast %cst_35 : f32 to vector<128x128xf32>
    %47 = arith.maximumf %45, %46 : vector<128x128xf32>
    %48 = arith.truncf %47 : vector<128x128xf32> to vector<128x128xbf16>
    %c0_36 = arith.constant 0 : index
    %c0_37 = arith.constant 0 : index
    %49 = vector.load %arg14[%c0_36, %c0_37] : memref<8x128xbf16, #tpu.memory_space<vmem>>, vector<8x128xbf16>
    %c0_38 = arith.constant 0 : index
    %c0_39 = arith.constant 0 : index
    %50 = vector.load %arg15[%c0_38, %c0_39] : memref<8x1xf32, #tpu.memory_space<vmem>>, vector<8x1xf32>
    %cst_40 = arith.constant dense<0.000000e+00> : vector<8x128xf32>
    %51 = tpu.matmul %49, %48, %cst_40 {dimension_numbers = #tpu.dot_dimension_numbers<[1], [0], [0], [1], [0, 0, 1, 1], [], []>} : vector<8x128xbf16>, vector<128x128xbf16>, vector<8x128xf32> -> vector<8x128xf32>
    %52 = vector.broadcast %50 : vector<8x1xf32> to vector<8x128xf32>
    %53 = arith.addf %51, %52 : vector<8x128xf32>
    %c0_41 = arith.constant 0 : index
    %c0_42 = arith.constant 0 : index
    %54 = vector.load %arg16[%c0_41, %c0_42] : memref<8x128xf32, #tpu.memory_space<vmem>>, vector<8x128xf32>
    tpu.vector_store %arg16[%c0_41, %c0_42], %53 {strides = array<i32>} : memref<8x128xf32, #tpu.memory_space<vmem>>, vector<8x128xf32>,
    return
  }
  func.func @transform_0(%arg0: i32) -> (i32, i32) {
    %c0_i32 = arith.constant 0 : i32
    %c0_i32_0 = arith.constant 0 : i32
    return %c0_i32, %arg0 : i32, i32
  }
  func.func @transform_1(%arg0: i32) -> (i32, i32) {
    %c0_i32 = arith.constant 0 : i32
    %c0_i32_0 = arith.constant 0 : i32
    %c0_i32_1 = arith.constant 0 : i32
    return %c0_i32, %c0_i32_0 : i32, i32
  }
  func.func @transform_2(%arg0: i32) -> (i32, i32) {
    %c0_i32 = arith.constant 0 : i32
    %c0_i32_0 = arith.constant 0 : i32
    %c0_i32_1 = arith.constant 0 : i32
    return %c0_i32, %c0_i32_0 : i32, i32
  }
  func.func @transform_3(%arg0: i32) -> (i32, i32) {
    %c0_i32 = arith.constant 0 : i32
    %c0_i32_0 = arith.constant 0 : i32
    %c0_i32_1 = arith.constant 0 : i32
    return %c0_i32, %c0_i32_0 : i32, i32
  }
  func.func @transform_4(%arg0: i32) -> (i32, i32) {
    %c0_i32 = arith.constant 0 : i32
    %c0_i32_0 = arith.constant 0 : i32
    %c0_i32_1 = arith.constant 0 : i32
    return %c0_i32, %c0_i32_0 : i32, i32
  }
  func.func @transform_5(%arg0: i32) -> (i32, i32) {
    %c0_i32 = arith.constant 0 : i32
    %c0_i32_0 = arith.constant 0 : i32
    %c0_i32_1 = arith.constant 0 : i32
    return %c0_i32, %c0_i32_0 : i32, i32
  }
  func.func @transform_6(%arg0: i32) -> (i32, i32) {
    %c0_i32 = arith.constant 0 : i32
    %c0_i32_0 = arith.constant 0 : i32
    %c0_i32_1 = arith.constant 0 : i32
    return %c0_i32, %c0_i32_0 : i32, i32
  }
  func.func @transform_7(%arg0: i32) -> (i32, i32) {
    %c0_i32 = arith.constant 0 : i32
    %c0_i32_0 = arith.constant 0 : i32
    %c0_i32_1 = arith.constant 0 : i32
    return %c0_i32, %c0_i32_0 : i32, i32
  }
  func.func @transform_8(%arg0: i32) -> (i32, i32) {
    %c0_i32 = arith.constant 0 : i32
    %c0_i32_0 = arith.constant 0 : i32
    %c0_i32_1 = arith.constant 0 : i32
    return %c0_i32, %c0_i32_0 : i32, i32
  }
  func.func @transform_9(%arg0: i32) -> (i32, i32) {
    %c0_i32 = arith.constant 0 : i32
    %c0_i32_0 = arith.constant 0 : i32
    %c0_i32_1 = arith.constant 0 : i32
    return %c0_i32, %c0_i32_0 : i32, i32
  }
  func.func @transform_10(%arg0: i32) -> (i32, i32) {
    %c0_i32 = arith.constant 0 : i32
    %c0_i32_0 = arith.constant 0 : i32
    %c0_i32_1 = arith.constant 0 : i32
    return %c0_i32, %c0_i32_0 : i32, i32
  }
  func.func @transform_11(%arg0: i32) -> (i32, i32) {
    %c0_i32 = arith.constant 0 : i32
    %c0_i32_0 = arith.constant 0 : i32
    %c0_i32_1 = arith.constant 0 : i32
    return %c0_i32, %c0_i32_0 : i32, i32
  }
  func.func @transform_12(%arg0: i32) -> (i32, i32) {
    %c0_i32 = arith.constant 0 : i32
    %c0_i32_0 = arith.constant 0 : i32
    %c0_i32_1 = arith.constant 0 : i32
    return %c0_i32, %c0_i32_0 : i32, i32
  }
  func.func @transform_13(%arg0: i32) -> (i32, i32) {
    %c0_i32 = arith.constant 0 : i32
    %c0_i32_0 = arith.constant 0 : i32
    %c0_i32_1 = arith.constant 0 : i32
    return %c0_i32, %c0_i32_0 : i32, i32
  }
  func.func @transform_14(%arg0: i32) -> (i32, i32) {
    %c0_i32 = arith.constant 0 : i32
    %c0_i32_0 = arith.constant 0 : i32
    %c0_i32_1 = arith.constant 0 : i32
    return %c0_i32, %c0_i32_0 : i32, i32
  }
  func.func @transform_15(%arg0: i32) -> (i32, i32) {
    %c0_i32 = arith.constant 0 : i32
    %c0_i32_0 = arith.constant 0 : i32
    return %c0_i32, %arg0 : i32, i32
  }
}

</mosaic_0001>

<llo_original>
// kernel: tpu_custom_call.1
$region0: #{tpu_custom_call.1}
  #allocation0 [shape = 'u32[]', space=smem, size = 0x4, offset = 0x4, fixed_abs, tag = 'smem constant byte address 0x4 - core index']
  #allocation1 [shape = 'u32[144,128]{1,0:T(1,128)}', space=vmem, size = 0x12000, scoped, tag = 'internal scratch']
  %s0 = inlined_call_operand.vmem [shape: bf16[128,128], index: 0, kind: input, shape index: {}]
  %s1 = inlined_call_operand.vmem [shape: bf16[128,128], index: 1, kind: input, shape index: {}]
  %s2 = inlined_call_operand.vmem [shape: f32[128,1], index: 2, kind: input, shape index: {}]
  %s3 = inlined_call_operand.vmem [shape: bf16[128,128], index: 3, kind: input, shape index: {}]
  %s4 = inlined_call_operand.vmem [shape: f32[128,1], index: 4, kind: input, shape index: {}]
  %s5 = inlined_call_operand.vmem [shape: bf16[128,128], index: 5, kind: input, shape index: {}]
  %s6 = inlined_call_operand.vmem [shape: f32[128,1], index: 6, kind: input, shape index: {}]
  %s7 = inlined_call_operand.vmem [shape: bf16[128,128], index: 7, kind: input, shape index: {}]
  %s8 = inlined_call_operand.vmem [shape: f32[128,1], index: 8, kind: input, shape index: {}]
  %s9 = inlined_call_operand.vmem [shape: bf16[128,128], index: 9, kind: input, shape index: {}]
  %s10 = inlined_call_operand.vmem [shape: f32[128,1], index: 10, kind: input, shape index: {}]
  %s11 = inlined_call_operand.vmem [shape: bf16[128,128], index: 11, kind: input, shape index: {}]
  %s12 = inlined_call_operand.vmem [shape: f32[128,1], index: 12, kind: input, shape index: {}]
  %s13 = inlined_call_operand.vmem [shape: bf16[8,128], index: 13, kind: input, shape index: {}]
  %s14 = inlined_call_operand.vmem [shape: f32[8,1], index: 14, kind: input, shape index: {}]
  %s15 = inlined_call_operand.hbm [shape: f32[8,128], index: 15, kind: output, shape index: {}]
  %s16 = sld [smem:[#allocation0]]
  $region70: #{tpu_custom_call.1} parent=0
    _
  %s18 = ssub.s32 1, %s16
  %s19 = scalar_select 0, %s18, %s16
  $region1: #{tpu_custom_call.1} parent=0
    #allocation2 [shape = 'u8[4096]{0}', space=vmem, size = 0x1000, scoped, tag = 'output window, operand 0, single buffered']
    #allocation3 [shape = 's32[1]{0}', space=sflag, size = 0x4, scoped, tag = 'scoped memory for tpu_custom_call.1']
    %20 = vsyncpa [#allocation3], 0
    // Predicated region
    $region2: #{tpu_custom_call.1} parent=1 // pred_check
      _
    $region3: #{tpu_custom_call.1} parent=1 // pred_check_branch
      %22 = sbr.rel (0) target = $region5
    $region4: #{tpu_custom_call.1} parent=1 // pred_region
      _
    $region5: #{tpu_custom_call.1} parent=1 // pred_fallthru
      _
    // Predicated region
    $region6: #{tpu_custom_call.1} parent=1 // pred_check
      _
    $region7: #{tpu_custom_call.1} parent=1 // pred_check_branch
      %24 = sbr.rel (0) target = $region9
    $region8: #{tpu_custom_call.1} parent=1 // pred_region
      _
    $region9: #{tpu_custom_call.1} parent=1 // pred_fallthru
      _
    // Predicated region
    $region10: #{tpu_custom_call.1} parent=1 // pred_check
      _
    $region11: #{tpu_custom_call.1} parent=1 // pred_check_branch
      %26 = sbr.rel (0) target = $region13
    $region12: #{tpu_custom_call.1} parent=1 // pred_region
      _
    $region13: #{tpu_custom_call.1} parent=1 // pred_fallthru
      _
    // Predicated region
    $region14: #{tpu_custom_call.1} parent=1 // pred_check
      _
    $region15: #{tpu_custom_call.1} parent=1 // pred_check_branch
      %28 = sbr.rel (0) target = $region17
    $region16: #{tpu_custom_call.1} parent=1 // pred_region
      _
    $region17: #{tpu_custom_call.1} parent=1 // pred_fallthru
      _
    // Predicated region
    $region18: #{tpu_custom_call.1} parent=1 // pred_check
      _
    $region19: #{tpu_custom_call.1} parent=1 // pred_check_branch
      %30 = sbr.rel (0) target = $region21
    $region20: #{tpu_custom_call.1} parent=1 // pred_region
      _
    $region21: #{tpu_custom_call.1} parent=1 // pred_fallthru
      _
    // Predicated region
    $region22: #{tpu_custom_call.1} parent=1 // pred_check
      _
    $region23: #{tpu_custom_call.1} parent=1 // pred_check_branch
      %32 = sbr.rel (0) target = $region25
    $region24: #{tpu_custom_call.1} parent=1 // pred_region
      _
    $region25: #{tpu_custom_call.1} parent=1 // pred_fallthru
      _
    // Predicated region
    $region26: #{tpu_custom_call.1} parent=1 // pred_check
      _
    $region27: #{tpu_custom_call.1} parent=1 // pred_check_branch
      %34 = sbr.rel (0) target = $region29
    $region28: #{tpu_custom_call.1} parent=1 // pred_region
      _
    $region29: #{tpu_custom_call.1} parent=1 // pred_fallthru
      _
    // Predicated region
    $region30: #{tpu_custom_call.1} parent=1 // pred_check
      _
    $region31: #{tpu_custom_call.1} parent=1 // pred_check_branch
      %36 = sbr.rel (0) target = $region33
    $region32: #{tpu_custom_call.1} parent=1 // pred_region
      _
    $region33: #{tpu_custom_call.1} parent=1 // pred_fallthru
      _
    // Predicated region
    $region34: #{tpu_custom_call.1} parent=1 // pred_check
      _
    $region35: #{tpu_custom_call.1} parent=1 // pred_check_branch
      %38 = sbr.rel (0) target = $region37
    $region36: #{tpu_custom_call.1} parent=1 // pred_region
      _
    $region37: #{tpu_custom_call.1} parent=1 // pred_fallthru
      _
    // Predicated region
    $region38: #{tpu_custom_call.1} parent=1 // pred_check
      _
    $region39: #{tpu_custom_call.1} parent=1 // pred_check_branch
      %40 = sbr.rel (0) target = $region41
    $region40: #{tpu_custom_call.1} parent=1 // pred_region
      _
    $region41: #{tpu_custom_call.1} parent=1 // pred_fallthru
      _
    // Predicated region
    $region42: #{tpu_custom_call.1} parent=1 // pred_check
      _
    $region43: #{tpu_custom_call.1} parent=1 // pred_check_branch
      %42 = sbr.rel (0) target = $region45
    $region44: #{tpu_custom_call.1} parent=1 // pred_region
      _
    $region45: #{tpu_custom_call.1} parent=1 // pred_fallthru
      _
    // Predicated region
    $region46: #{tpu_custom_call.1} parent=1 // pred_check
      _
    $region47: #{tpu_custom_call.1} parent=1 // pred_check_branch
      %44 = sbr.rel (0) target = $region49
    $region48: #{tpu_custom_call.1} parent=1 // pred_region
      _
    $region49: #{tpu_custom_call.1} parent=1 // pred_fallthru
      _
    // Predicated region
    $region50: #{tpu_custom_call.1} parent=1 // pred_check
      _
    $region51: #{tpu_custom_call.1} parent=1 // pred_check_branch
      %46 = sbr.rel (0) target = $region53
    $region52: #{tpu_custom_call.1} parent=1 // pred_region
      _
    $region53: #{tpu_custom_call.1} parent=1 // pred_fallthru
      _
    // Predicated region
    $region54: #{tpu_custom_call.1} parent=1 // pred_check
      _
    $region55: #{tpu_custom_call.1} parent=1 // pred_check_branch
      %48 = sbr.rel (0) target = $region57
    $region56: #{tpu_custom_call.1} parent=1 // pred_region
      _
    $region57: #{tpu_custom_call.1} parent=1 // pred_fallthru
      _
    // Predicated region
    $region58: #{tpu_custom_call.1} parent=1 // pred_check
      _
    $region59: #{tpu_custom_call.1} parent=1 // pred_check_branch
      %50 = sbr.rel (0) target = $region61
    $region60: #{tpu_custom_call.1} parent=1 // pred_region
      _
    $region61: #{tpu_custom_call.1} parent=1 // pred_fallthru
      _
    %v52 = vld [vmem:[%s0] sm:$0xf]
    %v53 = vld [vmem:[%s0 + $0x4] sm:$0xf]
    %v54 = vld [vmem:[%s0 + $0x8] sm:$0xf]
    %v55 = vld [vmem:[%s0 + $0xc] sm:$0xf]
    %v56 = vld [vmem:[%s0 + $0x10] sm:$0xf]
    %v57 = vld [vmem:[%s0 + $0x14] sm:$0xf]
    %v58 = vld [vmem:[%s0 + $0x18] sm:$0xf]
    %v59 = vld [vmem:[%s0 + $0x1c] sm:$0xf]
    %v60 = vld [vmem:[%s0 + $0x20] sm:$0xf]
    %v61 = vld [vmem:[%s0 + $0x24] sm:$0xf]
    %v62 = vld [vmem:[%s0 + $0x28] sm:$0xf]
    %v63 = vld [vmem:[%s0 + $0x2c] sm:$0xf]
    %v64 = vld [vmem:[%s0 + $0x30] sm:$0xf]
    %v65 = vld [vmem:[%s0 + $0x34] sm:$0xf]
    %v66 = vld [vmem:[%s0 + $0x38] sm:$0xf]
    %v67 = vld [vmem:[%s0 + $0x3c] sm:$0xf]
    %v68 = vld [vmem:[%s1] sm:$0xf]
    %v69 = vld [vmem:[%s1 + $0x4] sm:$0xf]
    %v70 = vld [vmem:[%s1 + $0x8] sm:$0xf]
    %v71 = vld [vmem:[%s1 + $0xc] sm:$0xf]
    %v72 = vld [vmem:[%s1 + $0x10] sm:$0xf]
    %v73 = vld [vmem:[%s1 + $0x14] sm:$0xf]
    %v74 = vld [vmem:[%s1 + $0x18] sm:$0xf]
    %v75 = vld [vmem:[%s1 + $0x1c] sm:$0xf]
    %v76 = vld [vmem:[%s1 + $0x20] sm:$0xf]
    %v77 = vld [vmem:[%s1 + $0x24] sm:$0xf]
    %v78 = vld [vmem:[%s1 + $0x28] sm:$0xf]
    %v79 = vld [vmem:[%s1 + $0x2c] sm:$0xf]
    %v80 = vld [vmem:[%s1 + $0x30] sm:$0xf]
    %v81 = vld [vmem:[%s1 + $0x34] sm:$0xf]
    %v82 = vld [vmem:[%s1 + $0x38] sm:$0xf]
    %v83 = vld [vmem:[%s1 + $0x3c] sm:$0xf]
    %v84 = vld [vmem:[%s2] sm:$0xff]
    %v85 = vld [vmem:[%s2 + $0x8] sm:$0xff]
    %v86 = vld [vmem:[%s2 + $0x10] sm:$0xff]
    %v87 = vld [vmem:[%s2 + $0x18] sm:$0xff]
    %v88 = vld [vmem:[%s2 + $0x20] sm:$0xff]
    %v89 = vld [vmem:[%s2 + $0x28] sm:$0xff]
    %v90 = vld [vmem:[%s2 + $0x30] sm:$0xff]
    %v91 = vld [vmem:[%s2 + $0x38] sm:$0xff]
    %v92 = vld [vmem:[%s2 + $0x40] sm:$0xff]
    %v93 = vld [vmem:[%s2 + $0x48] sm:$0xff]
    %v94 = vld [vmem:[%s2 + $0x50] sm:$0xff]
    %v95 = vld [vmem:[%s2 + $0x58] sm:$0xff]
    %v96 = vld [vmem:[%s2 + $0x60] sm:$0xff]
    %v97 = vld [vmem:[%s2 + $0x68] sm:$0xff]
    %v98 = vld [vmem:[%s2 + $0x70] sm:$0xff]
    %v99 = vld [vmem:[%s2 + $0x78] sm:$0xff]
    %101 = vset.pattern.permute.xlu0 0
    %102 = vperm.xlu0 %101, %v84
    %v103 = vpop.permute.xlu0 %102
    %106 = vset.pattern.permute.xlu0 0
    %107 = vperm.xlu0 %106, %v85
    %v108 = vpop.permute.xlu0 %107
    %111 = vset.pattern.permute.xlu0 0
    %112 = vperm.xlu0 %111, %v86
    %v113 = vpop.permute.xlu0 %112
    %116 = vset.pattern.permute.xlu0 0
    %117 = vperm.xlu0 %116, %v87
    %v118 = vpop.permute.xlu0 %117
    %121 = vset.pattern.permute.xlu0 0
    %122 = vperm.xlu0 %121, %v88
    %v123 = vpop.permute.xlu0 %122
    %126 = vset.pattern.permute.xlu0 0
    %127 = vperm.xlu0 %126, %v89
    %v128 = vpop.permute.xlu0 %127
    %131 = vset.pattern.permute.xlu0 0
    %132 = vperm.xlu0 %131, %v90
    %v133 = vpop.permute.xlu0 %132
    %136 = vset.pattern.permute.xlu0 0
    %137 = vperm.xlu0 %136, %v91
    %v138 = vpop.permute.xlu0 %137
    %141 = vset.pattern.permute.xlu0 0
    %142 = vperm.xlu0 %141, %v92
    %v143 = vpop.permute.xlu0 %142
    %146 = vset.pattern.permute.xlu0 0
    %147 = vperm.xlu0 %146, %v93
    %v148 = vpop.permute.xlu0 %147
    %151 = vset.pattern.permute.xlu0 0
    %152 = vperm.xlu0 %151, %v94
    %v153 = vpop.permute.xlu0 %152
    %156 = vset.pattern.permute.xlu0 0
    %157 = vperm.xlu0 %156, %v95
    %v158 = vpop.permute.xlu0 %157
    %161 = vset.pattern.permute.xlu0 0
    %162 = vperm.xlu0 %161, %v96
    %v163 = vpop.permute.xlu0 %162
    %166 = vset.pattern.permute.xlu0 0
    %167 = vperm.xlu0 %166, %v97
    %v168 = vpop.permute.xlu0 %167
    %171 = vset.pattern.permute.xlu0 0
    %172 = vperm.xlu0 %171, %v98
    %v173 = vpop.permute.xlu0 %172
    %176 = vset.pattern.permute.xlu0 0
    %177 = vperm.xlu0 %176, %v99
    %v178 = vpop.permute.xlu0 %177
    %v196 = vunpack.c.l.b16 %v68
    %v197 = vunpack.c.l.b16 %v69
    %v198 = vunpack.c.l.b16 %v70
    %v199 = vunpack.c.l.b16 %v71
    %v200 = vunpack.c.l.b16 %v72
    %v201 = vunpack.c.l.b16 %v73
    %v202 = vunpack.c.l.b16 %v74
    %v203 = vunpack.c.l.b16 %v75
    %v204 = vunpack.c.l.b16 %v76
    %v205 = vunpack.c.l.b16 %v77
    %v206 = vunpack.c.l.b16 %v78
    %v207 = vunpack.c.l.b16 %v79
    %v208 = vunpack.c.l.b16 %v80
    %v209 = vunpack.c.l.b16 %v81
    %v210 = vunpack.c.l.b16 %v82
    %v211 = vunpack.c.l.b16 %v83
    %v212 = vpack.c.b16 %v197, %v196
    %v213 = vpack.c.b16 %v199, %v198
    %v214 = vpack.c.b16 %v201, %v200
    %v215 = vpack.c.b16 %v203, %v202
    %v216 = vpack.c.b16 %v205, %v204
    %v217 = vpack.c.b16 %v207, %v206
    %v218 = vpack.c.b16 %v209, %v208
    %v219 = vpack.c.b16 %v211, %v210
    %v244 = vunpack.c.l.b16 %v52
    %v245 = vunpack.c.l.b16 %v53
    %v246 = vunpack.c.l.b16 %v54
    %v247 = vunpack.c.l.b16 %v55
    %v248 = vunpack.c.l.b16 %v56
    %v249 = vunpack.c.l.b16 %v57
    %v250 = vunpack.c.l.b16 %v58
    %v251 = vunpack.c.l.b16 %v59
    %v252 = vunpack.c.l.b16 %v60
    %v253 = vunpack.c.l.b16 %v61
    %v254 = vunpack.c.l.b16 %v62
    %v255 = vunpack.c.l.b16 %v63
    %v256 = vunpack.c.l.b16 %v64
    %v257 = vunpack.c.l.b16 %v65
    %v258 = vunpack.c.l.b16 %v66
    %v259 = vunpack.c.l.b16 %v67
    %v260 = vpack.c.b16 %v245, %v244
    %v261 = vpack.c.b16 %v247, %v246
    %v262 = vpack.c.b16 %v249, %v248
    %v263 = vpack.c.b16 %v251, %v250
    %v264 = vpack.c.b16 %v253, %v252
    %v265 = vpack.c.b16 %v255, %v254
    %v266 = vpack.c.b16 %v257, %v256
    %v267 = vpack.c.b16 %v259, %v258
    %276 = vmatprep.subr.bf16.mxu0 0
    %277 = vmatpush1.bf16.msra.mxu0 %v260
    %278 = vmatprep.subr.bf16.mxu0 0
    %279 = vmatpush1.bf16.msra.mxu0 %v261
    %280 = vmatprep.subr.bf16.mxu0 0
    %281 = vmatpush1.bf16.msra.mxu0 %v262
    %282 = vmatprep.subr.bf16.mxu0 0
    %283 = vmatpush1.bf16.msra.mxu0 %v263
    %284 = vmatprep.subr.bf16.mxu0 0
    %285 = vmatpush1.bf16.msra.mxu0 %v264
    %286 = vmatprep.subr.bf16.mxu0 0
    %287 = vmatpush1.bf16.msra.mxu0 %v265
    %288 = vmatprep.subr.bf16.mxu0 0
    %289 = vmatpush1.bf16.msra.mxu0 %v266
    %290 = vmatprep.subr.bf16.mxu0 0
    %291 = vmatpush1.bf16.msra.mxu0 %v267
    %292 = vmatprep.subr.bf16.mxu0 0
    %293 = vmatpush1.bf16.msra.mxu0 0
    %294 = vmatprep.subr.bf16.mxu0 0
    %295 = vmatpush1.bf16.msra.mxu0 0
    %296 = vmatprep.subr.bf16.mxu0 0
    %297 = vmatpush1.bf16.msra.mxu0 0
    %298 = vmatprep.subr.bf16.mxu0 0
    %299 = vmatpush1.bf16.msra.mxu0 0
    %300 = vmatprep.subr.bf16.mxu0 0
    %301 = vmatpush1.bf16.msra.mxu0 0
    %302 = vmatprep.subr.bf16.mxu0 0
    %303 = vmatpush1.bf16.msra.mxu0 0
    %304 = vmatprep.subr.bf16.mxu0 0
    %305 = vmatpush1.bf16.msra.mxu0 0
    %306 = vmatprep.subr.bf16.mxu0 0
    %307 = vmatpush1.bf16.msra.mxu0 0
    %308 = vmatprep.mubr.bf16.mxu0 0
    %309 = vmatmul.mubr.bf16.gmra.mrb[0].mxu0 %v212
    %v310 = vpop.f32.mrb[0].mxu0
    %v311 = vadd.f32 %v103, %v310
    %v312 = vpop.f32.mrb[0].mxu0
    %v313 = vpop.f32.mrb[0].mxu0
    %v314 = vadd.f32 %v108, %v313
    %v315 = vpop.f32.mrb[0].mxu0
    %316 = vmatprep.mubr.bf16.mxu0 0
    %317 = vmatmul.mubr.bf16.gmra.mrb[0].mxu0 %v213
    %v318 = vpop.f32.mrb[0].mxu0
    %v319 = vadd.f32 %v113, %v318
    %v320 = vpop.f32.mrb[0].mxu0
    %v321 = vpop.f32.mrb[0].mxu0
    %v322 = vadd.f32 %v118, %v321
    %v323 = vpop.f32.mrb[0].mxu0
    %324 = vmatprep.mubr.bf16.mxu0 0
    %325 = vmatmul.mubr.bf16.gmra.mrb[0].mxu0 %v214
    %v326 = vpop.f32.mrb[0].mxu0
    %v327 = vadd.f32 %v123, %v326
    %v328 = vpop.f32.mrb[0].mxu0
    %v329 = vpop.f32.mrb[0].mxu0
    %v330 = vadd.f32 %v128, %v329
    %v331 = vpop.f32.mrb[0].mxu0
    %332 = vmatprep.mubr.bf16.mxu0 0
    %333 = vmatmul.mubr.bf16.gmra.mrb[0].mxu0 %v215
    %v334 = vpop.f32.mrb[0].mxu0
    %v335 = vadd.f32 %v133, %v334
    %v336 = vpop.f32.mrb[0].mxu0
    %v337 = vpop.f32.mrb[0].mxu0
    %v338 = vadd.f32 %v138, %v337
    %v339 = vpop.f32.mrb[0].mxu0
    %340 = vmatprep.mubr.bf16.mxu0 0
    %341 = vmatmul.mubr.bf16.gmra.mrb[0].mxu0 %v216
    %v342 = vpop.f32.mrb[0].mxu0
    %v343 = vadd.f32 %v143, %v342
    %v344 = vpop.f32.mrb[0].mxu0
    %v345 = vpop.f32.mrb[0].mxu0
    %v346 = vadd.f32 %v148, %v345
    %v347 = vpop.f32.mrb[0].mxu0
    %348 = vmatprep.mubr.bf16.mxu0 0
    %349 = vmatmul.mubr.bf16.gmra.mrb[0].mxu0 %v217
    %v350 = vpop.f32.mrb[0].mxu0
    %v351 = vadd.f32 %v153, %v350
    %v352 = vpop.f32.mrb[0].mxu0
    %v353 = vpop.f32.mrb[0].mxu0
    %v354 = vadd.f32 %v158, %v353
    %v355 = vpop.f32.mrb[0].mxu0
    %356 = vmatprep.mubr.bf16.mxu0 0
    %357 = vmatmul.mubr.bf16.gmra.mrb[0].mxu0 %v218
    %v358 = vpop.f32.mrb[0].mxu0
    %v359 = vadd.f32 %v163, %v358
    %v360 = vpop.f32.mrb[0].mxu0
    %v361 = vpop.f32.mrb[0].mxu0
    %v362 = vadd.f32 %v168, %v361
    %v363 = vpop.f32.mrb[0].mxu0
    %364 = vmatprep.mubr.bf16.mxu0 0
    %365 = vmatmul.mubr.bf16.gmra.mrb[0].mxu0 %v219
    %v366 = vpop.f32.mrb[0].mxu0
    %v367 = vadd.f32 %v173, %v366
    %v368 = vpop.f32.mrb[0].mxu0
    %v369 = vpop.f32.mrb[0].mxu0
    %v370 = vadd.f32 %v178, %v369
    %v371 = vpop.f32.mrb[0].mxu0
    %372 = vdwg.mxu0
    %v373 = vmax.f32 %v311, 0.0
    %v374 = vmax.f32 %v314, 0.0
    %v375 = vmax.f32 %v319, 0.0
    %v376 = vmax.f32 %v322, 0.0
    %v377 = vmax.f32 %v327, 0.0
    %v378 = vmax.f32 %v330, 0.0
    %v379 = vmax.f32 %v335, 0.0
    %v380 = vmax.f32 %v338, 0.0
    %v381 = vmax.f32 %v343, 0.0
    %v382 = vmax.f32 %v346, 0.0
    %v383 = vmax.f32 %v351, 0.0
    %v384 = vmax.f32 %v354, 0.0
    %v385 = vmax.f32 %v359, 0.0
    %v386 = vmax.f32 %v362, 0.0
    %v387 = vmax.f32 %v367, 0.0
    %v388 = vmax.f32 %v370, 0.0
    %v389 = vpack.c.bf16 %v374, %v373
    %v390 = vpack.c.bf16 %v376, %v375
    %v391 = vpack.c.bf16 %v378, %v377
    %v392 = vpack.c.bf16 %v380, %v379
    %v393 = vpack.c.bf16 %v382, %v381
    %v394 = vpack.c.bf16 %v384, %v383
    %v395 = vpack.c.bf16 %v386, %v385
    %v396 = vpack.c.bf16 %v388, %v387
    %v397 = vld [vmem:[%s3] sm:$0xf]
    %v398 = vld [vmem:[%s3 + $0x4] sm:$0xf]
    %v399 = vld [vmem:[%s3 + $0x8] sm:$0xf]
    %v400 = vld [vmem:[%s3 + $0xc] sm:$0xf]
    %v401 = vld [vmem:[%s3 + $0x10] sm:$0xf]
    %v402 = vld [vmem:[%s3 + $0x14] sm:$0xf]
    %v403 = vld [vmem:[%s3 + $0x18] sm:$0xf]
    %v404 = vld [vmem:[%s3 + $0x1c] sm:$0xf]
    %v405 = vld [vmem:[%s3 + $0x20] sm:$0xf]
    %v406 = vld [vmem:[%s3 + $0x24] sm:$0xf]
    %v407 = vld [vmem:[%s3 + $0x28] sm:$0xf]
    %v408 = vld [vmem:[%s3 + $0x2c] sm:$0xf]
    %v409 = vld [vmem:[%s3 + $0x30] sm:$0xf]
    %v410 = vld [vmem:[%s3 + $0x34] sm:$0xf]
    %v411 = vld [vmem:[%s3 + $0x38] sm:$0xf]
    %v412 = vld [vmem:[%s3 + $0x3c] sm:$0xf]
    %v413 = vld [vmem:[%s4] sm:$0xff]
    %v414 = vld [vmem:[%s4 + $0x8] sm:$0xff]
    %v415 = vld [vmem:[%s4 + $0x10] sm:$0xff]
    %v416 = vld [vmem:[%s4 + $0x18] sm:$0xff]
    %v417 = vld [vmem:[%s4 + $0x20] sm:$0xff]
    %v418 = vld [vmem:[%s4 + $0x28] sm:$0xff]
    %v419 = vld [vmem:[%s4 + $0x30] sm:$0xff]
    %v420 = vld [vmem:[%s4 + $0x38] sm:$0xff]
    %v421 = vld [vmem:[%s4 + $0x40] sm:$0xff]
    %v422 = vld [vmem:[%s4 + $0x48] sm:$0xff]
    %v423 = vld [vmem:[%s4 + $0x50] sm:$0xff]
    %v424 = vld [vmem:[%s4 + $0x58] sm:$0xff]
    %v425 = vld [vmem:[%s4 + $0x60] sm:$0xff]
    %v426 = vld [vmem:[%s4 + $0x68] sm:$0xff]
    %v427 = vld [vmem:[%s4 + $0x70] sm:$0xff]
    %v428 = vld [vmem:[%s4 + $0x78] sm:$0xff]
    %430 = vset.pattern.permute.xlu0 0
    %431 = vperm.xlu0 %430, %v413
    %v432 = vpop.permute.xlu0 %431
    %435 = vset.pattern.permute.xlu0 0
    %436 = vperm.xlu0 %435, %v414
    %v437 = vpop.permute.xlu0 %436
    %440 = vset.pattern.permute.xlu0 0
    %441 = vperm.xlu0 %440, %v415
    %v442 = vpop.permute.xlu0 %441
    %445 = vset.pattern.permute.xlu0 0
    %446 = vperm.xlu0 %445, %v416
    %v447 = vpop.permute.xlu0 %446
    %450 = vset.pattern.permute.xlu0 0
    %451 = vperm.xlu0 %450, %v417
    %v452 = vpop.permute.xlu0 %451
    %455 = vset.pattern.permute.xlu0 0
    %456 = vperm.xlu0 %455, %v418
    %v457 = vpop.permute.xlu0 %456
    %460 = vset.pattern.permute.xlu0 0
    %461 = vperm.xlu0 %460, %v419
    %v462 = vpop.permute.xlu0 %461
    %465 = vset.pattern.permute.xlu0 0
    %466 = vperm.xlu0 %465, %v420
    %v467 = vpop.permute.xlu0 %466
    %470 = vset.pattern.permute.xlu0 0
    %471 = vperm.xlu0 %470, %v421
    %v472 = vpop.permute.xlu0 %471
    %475 = vset.pattern.permute.xlu0 0
    %476 = vperm.xlu0 %475, %v422
    %v477 = vpop.permute.xlu0 %476
    %480 = vset.pattern.permute.xlu0 0
    %481 = vperm.xlu0 %480, %v423
    %v482 = vpop.permute.xlu0 %481
    %485 = vset.pattern.permute.xlu0 0
    %486 = vperm.xlu0 %485, %v424
    %v487 = vpop.permute.xlu0 %486
    %490 = vset.pattern.permute.xlu0 0
    %491 = vperm.xlu0 %490, %v425
    %v492 = vpop.permute.xlu0 %491
    %495 = vset.pattern.permute.xlu0 0
    %496 = vperm.xlu0 %495, %v426
    %v497 = vpop.permute.xlu0 %496
    %500 = vset.pattern.permute.xlu0 0
    %501 = vperm.xlu0 %500, %v427
    %v502 = vpop.permute.xlu0 %501
    %505 = vset.pattern.permute.xlu0 0
    %506 = vperm.xlu0 %505, %v428
    %v507 = vpop.permute.xlu0 %506
    %v525 = vunpack.c.l.b16 %v397
    %v526 = vunpack.c.l.b16 %v398
    %v527 = vunpack.c.l.b16 %v399
    %v528 = vunpack.c.l.b16 %v400
    %v529 = vunpack.c.l.b16 %v401
    %v530 = vunpack.c.l.b16 %v402
    %v531 = vunpack.c.l.b16 %v403
    %v532 = vunpack.c.l.b16 %v404
    %v533 = vunpack.c.l.b16 %v405
    %v534 = vunpack.c.l.b16 %v406
    %v535 = vunpack.c.l.b16 %v407
    %v536 = vunpack.c.l.b16 %v408
    %v537 = vunpack.c.l.b16 %v409
    %v538 = vunpack.c.l.b16 %v410
    %v539 = vunpack.c.l.b16 %v411
    %v540 = vunpack.c.l.b16 %v412
    %v541 = vpack.c.b16 %v526, %v525
    %v542 = vpack.c.b16 %v528, %v527
    %v543 = vpack.c.b16 %v530, %v529
    %v544 = vpack.c.b16 %v532, %v531
    %v545 = vpack.c.b16 %v534, %v533
    %v546 = vpack.c.b16 %v536, %v535
    %v547 = vpack.c.b16 %v538, %v537
    %v548 = vpack.c.b16 %v540, %v539
    %557 = vmatprep.subr.bf16.mxu0 0
    %558 = vmatpush1.bf16.msra.mxu0 %v389
    %559 = vmatprep.subr.bf16.mxu0 0
    %560 = vmatpush1.bf16.msra.mxu0 %v390
    %561 = vmatprep.subr.bf16.mxu0 0
    %562 = vmatpush1.bf16.msra.mxu0 %v391
    %563 = vmatprep.subr.bf16.mxu0 0
    %564 = vmatpush1.bf16.msra.mxu0 %v392
    %565 = vmatprep.subr.bf16.mxu0 0
    %566 = vmatpush1.bf16.msra.mxu0 %v393
    %567 = vmatprep.subr.bf16.mxu0 0
    %568 = vmatpush1.bf16.msra.mxu0 %v394
    %569 = vmatprep.subr.bf16.mxu0 0
    %570 = vmatpush1.bf16.msra.mxu0 %v395
    %571 = vmatprep.subr.bf16.mxu0 0
    %572 = vmatpush1.bf16.msra.mxu0 %v396
    %573 = vmatprep.subr.bf16.mxu0 0
    %574 = vmatpush1.bf16.msra.mxu0 0
    %575 = vmatprep.subr.bf16.mxu0 0
    %576 = vmatpush1.bf16.msra.mxu0 0
    %577 = vmatprep.subr.bf16.mxu0 0
    %578 = vmatpush1.bf16.msra.mxu0 0
    %579 = vmatprep.subr.bf16.mxu0 0
    %580 = vmatpush1.bf16.msra.mxu0 0
    %581 = vmatprep.subr.bf16.mxu0 0
    %582 = vmatpush1.bf16.msra.mxu0 0
    %583 = vmatprep.subr.bf16.mxu0 0
    %584 = vmatpush1.bf16.msra.mxu0 0
    %585 = vmatprep.subr.bf16.mxu0 0
    %586 = vmatpush1.bf16.msra.mxu0 0
    %587 = vmatprep.subr.bf16.mxu0 0
    %588 = vmatpush1.bf16.msra.mxu0 0
    %589 = vmatprep.mubr.bf16.mxu0 0
    %590 = vmatmul.mubr.bf16.gmra.mrb[0].mxu0 %v541
    %v591 = vpop.f32.mrb[0].mxu0
    %v592 = vadd.f32 %v432, %v591
    %v593 = vpop.f32.mrb[0].mxu0
    %v594 = vpop.f32.mrb[0].mxu0
    %v595 = vadd.f32 %v437, %v594
    %v596 = vpop.f32.mrb[0].mxu0
    %597 = vmatprep.mubr.bf16.mxu0 0
    %598 = vmatmul.mubr.bf16.gmra.mrb[0].mxu0 %v542
    %v599 = vpop.f32.mrb[0].mxu0
    %v600 = vadd.f32 %v442, %v599
    %v601 = vpop.f32.mrb[0].mxu0
    %v602 = vpop.f32.mrb[0].mxu0
    %v603 = vadd.f32 %v447, %v602
    %v604 = vpop.f32.mrb[0].mxu0
    %605 = vmatprep.mubr.bf16.mxu0 0
    %606 = vmatmul.mubr.bf16.gmra.mrb[0].mxu0 %v543
    %v607 = vpop.f32.mrb[0].mxu0
    %v608 = vadd.f32 %v452, %v607
    %v609 = vpop.f32.mrb[0].mxu0
    %v610 = vpop.f32.mrb[0].mxu0
    %v611 = vadd.f32 %v457, %v610
    %v612 = vpop.f32.mrb[0].mxu0
    %613 = vmatprep.mubr.bf16.mxu0 0
    %614 = vmatmul.mubr.bf16.gmra.mrb[0].mxu0 %v544
    %v615 = vpop.f32.mrb[0].mxu0
    %v616 = vadd.f32 %v462, %v615
    %v617 = vpop.f32.mrb[0].mxu0
    %v618 = vpop.f32.mrb[0].mxu0
    %v619 = vadd.f32 %v467, %v618
    %v620 = vpop.f32.mrb[0].mxu0
    %621 = vmatprep.mubr.bf16.mxu0 0
    %622 = vmatmul.mubr.bf16.gmra.mrb[0].mxu0 %v545
    %v623 = vpop.f32.mrb[0].mxu0
    %v624 = vadd.f32 %v472, %v623
    %v625 = vpop.f32.mrb[0].mxu0
    %v626 = vpop.f32.mrb[0].mxu0
    %v627 = vadd.f32 %v477, %v626
    %v628 = vpop.f32.mrb[0].mxu0
    %629 = vmatprep.mubr.bf16.mxu0 0
    %630 = vmatmul.mubr.bf16.gmra.mrb[0].mxu0 %v546
    %v631 = vpop.f32.mrb[0].mxu0
    %v632 = vadd.f32 %v482, %v631
    %v633 = vpop.f32.mrb[0].mxu0
    %v634 = vpop.f32.mrb[0].mxu0
    %v635 = vadd.f32 %v487, %v634
    %v636 = vpop.f32.mrb[0].mxu0
    %637 = vmatprep.mubr.bf16.mxu0 0
    %638 = vmatmul.mubr.bf16.gmra.mrb[0].mxu0 %v547
    %v639 = vpop.f32.mrb[0].mxu0
    %v640 = vadd.f32 %v492, %v639
    %v641 = vpop.f32.mrb[0].mxu0
    %v642 = vpop.f32.mrb[0].mxu0
    %v643 = vadd.f32 %v497, %v642
    %v644 = vpop.f32.mrb[0].mxu0
    %645 = vmatprep.mubr.bf16.mxu0 0
    %646 = vmatmul.mubr.bf16.gmra.mrb[0].mxu0 %v548
    %v647 = vpop.f32.mrb[0].mxu0
    %v648 = vadd.f32 %v502, %v647
    %v649 = vpop.f32.mrb[0].mxu0
    %v650 = vpop.f32.mrb[0].mxu0
    %v651 = vadd.f32 %v507, %v650
    %v652 = vpop.f32.mrb[0].mxu0
    %653 = vdwg.mxu0
    %v654 = vmax.f32 %v592, 0.0
    %v655 = vmax.f32 %v595, 0.0
    %v656 = vmax.f32 %v600, 0.0
    %v657 = vmax.f32 %v603, 0.0
    %v658 = vmax.f32 %v608, 0.0
    %v659 = vmax.f32 %v611, 0.0
    %v660 = vmax.f32 %v616, 0.0
    %v661 = vmax.f32 %v619, 0.0
    %v662 = vmax.f32 %v624, 0.0
    %v663 = vmax.f32 %v627, 0.0
    %v664 = vmax.f32 %v632, 0.0
    %v665 = vmax.f32 %v635, 0.0
    %v666 = vmax.f32 %v640, 0.0
    %v667 = vmax.f32 %v643, 0.0
    %v668 = vmax.f32 %v648, 0.0
    %v669 = vmax.f32 %v651, 0.0
    %v670 = vpack.c.bf16 %v655, %v654
    %v671 = vpack.c.bf16 %v657, %v656
    %v672 = vpack.c.bf16 %v659, %v658
    %v673 = vpack.c.bf16 %v661, %v660
    %v674 = vpack.c.bf16 %v663, %v662
    %v675 = vpack.c.bf16 %v665, %v664
    %v676 = vpack.c.bf16 %v667, %v666
    %v677 = vpack.c.bf16 %v669, %v668
    %v678 = vld [vmem:[%s5] sm:$0xf]
    %v679 = vld [vmem:[%s5 + $0x4] sm:$0xf]
    %v680 = vld [vmem:[%s5 + $0x8] sm:$0xf]
    %v681 = vld [vmem:[%s5 + $0xc] sm:$0xf]
    %v682 = vld [vmem:[%s5 + $0x10] sm:$0xf]
    %v683 = vld [vmem:[%s5 + $0x14] sm:$0xf]
    %v684 = vld [vmem:[%s5 + $0x18] sm:$0xf]
    %v685 = vld [vmem:[%s5 + $0x1c] sm:$0xf]
    %v686 = vld [vmem:[%s5 + $0x20] sm:$0xf]
    %v687 = vld [vmem:[%s5 + $0x24] sm:$0xf]
    %v688 = vld [vmem:[%s5 + $0x28] sm:$0xf]
    %v689 = vld [vmem:[%s5 + $0x2c] sm:$0xf]
    %v690 = vld [vmem:[%s5 + $0x30] sm:$0xf]
    %v691 = vld [vmem:[%s5 + $0x34] sm:$0xf]
    %v692 = vld [vmem:[%s5 + $0x38] sm:$0xf]
    %v693 = vld [vmem:[%s5 + $0x3c] sm:$0xf]
    %v694 = vld [vmem:[%s6] sm:$0xff]
    %v695 = vld [vmem:[%s6 + $0x8] sm:$0xff]
    %v696 = vld [vmem:[%s6 + $0x10] sm:$0xff]
    %v697 = vld [vmem:[%s6 + $0x18] sm:$0xff]
    %v698 = vld [vmem:[%s6 + $0x20] sm:$0xff]
    %v699 = vld [vmem:[%s6 + $0x28] sm:$0xff]
    %v700 = vld [vmem:[%s6 + $0x30] sm:$0xff]
    %v701 = vld [vmem:[%s6 + $0x38] sm:$0xff]
    %v702 = vld [vmem:[%s6 + $0x40] sm:$0xff]
    %v703 = vld [vmem:[%s6 + $0x48] sm:$0xff]
    %v704 = vld [vmem:[%s6 + $0x50] sm:$0xff]
    %v705 = vld [vmem:[%s6 + $0x58] sm:$0xff]
    %v706 = vld [vmem:[%s6 + $0x60] sm:$0xff]
    %v707 = vld [vmem:[%s6 + $0x68] sm:$0xff]
    %v708 = vld [vmem:[%s6 + $0x70] sm:$0xff]
    %v709 = vld [vmem:[%s6 + $0x78] sm:$0xff]
    %711 = vset.pattern.permute.xlu0 0
    %712 = vperm.xlu0 %711, %v694
    %v713 = vpop.permute.xlu0 %712
    %716 = vset.pattern.permute.xlu0 0
    %717 = vperm.xlu0 %716, %v695
    %v718 = vpop.permute.xlu0 %717
    %721 = vset.pattern.permute.xlu0 0
    %722 = vperm.xlu0 %721, %v696
    %v723 = vpop.permute.xlu0 %722
    %726 = vset.pattern.permute.xlu0 0
    %727 = vperm.xlu0 %726, %v697
    %v728 = vpop.permute.xlu0 %727
    %731 = vset.pattern.permute.xlu0 0
    %732 = vperm.xlu0 %731, %v698
    %v733 = vpop.permute.xlu0 %732
    %736 = vset.pattern.permute.xlu0 0
    %737 = vperm.xlu0 %736, %v699
    %v738 = vpop.permute.xlu0 %737
    %741 = vset.pattern.permute.xlu0 0
    %742 = vperm.xlu0 %741, %v700
    %v743 = vpop.permute.xlu0 %742
    %746 = vset.pattern.permute.xlu0 0
    %747 = vperm.xlu0 %746, %v701
    %v748 = vpop.permute.xlu0 %747
    %751 = vset.pattern.permute.xlu0 0
    %752 = vperm.xlu0 %751, %v702
    %v753 = vpop.permute.xlu0 %752
    %756 = vset.pattern.permute.xlu0 0
    %757 = vperm.xlu0 %756, %v703
    %v758 = vpop.permute.xlu0 %757
    %761 = vset.pattern.permute.xlu0 0
    %762 = vperm.xlu0 %761, %v704
    %v763 = vpop.permute.xlu0 %762
    %766 = vset.pattern.permute.xlu0 0
    %767 = vperm.xlu0 %766, %v705
    %v768 = vpop.permute.xlu0 %767
    %771 = vset.pattern.permute.xlu0 0
    %772 = vperm.xlu0 %771, %v706
    %v773 = vpop.permute.xlu0 %772
    %776 = vset.pattern.permute.xlu0 0
    %777 = vperm.xlu0 %776, %v707
    %v778 = vpop.permute.xlu0 %777
    %781 = vset.pattern.permute.xlu0 0
    %782 = vperm.xlu0 %781, %v708
    %v783 = vpop.permute.xlu0 %782
    %786 = vset.pattern.permute.xlu0 0
    %787 = vperm.xlu0 %786, %v709
    %v788 = vpop.permute.xlu0 %787
    %v806 = vunpack.c.l.b16 %v678
    %v807 = vunpack.c.l.b16 %v679
    %v808 = vunpack.c.l.b16 %v680
    %v809 = vunpack.c.l.b16 %v681
    %v810 = vunpack.c.l.b16 %v682
    %v811 = vunpack.c.l.b16 %v683
    %v812 = vunpack.c.l.b16 %v684
    %v813 = vunpack.c.l.b16 %v685
    %v814 = vunpack.c.l.b16 %v686
    %v815 = vunpack.c.l.b16 %v687
    %v816 = vunpack.c.l.b16 %v688
    %v817 = vunpack.c.l.b16 %v689
    %v818 = vunpack.c.l.b16 %v690
    %v819 = vunpack.c.l.b16 %v691
    %v820 = vunpack.c.l.b16 %v692
    %v821 = vunpack.c.l.b16 %v693
    %v822 = vpack.c.b16 %v807, %v806
    %v823 = vpack.c.b16 %v809, %v808
    %v824 = vpack.c.b16 %v811, %v810
    %v825 = vpack.c.b16 %v813, %v812
    %v826 = vpack.c.b16 %v815, %v814
    %v827 = vpack.c.b16 %v817, %v816
    %v828 = vpack.c.b16 %v819, %v818
    %v829 = vpack.c.b16 %v821, %v820
    %838 = vmatprep.subr.bf16.mxu0 0
    %839 = vmatpush1.bf16.msra.mxu0 %v670
    %840 = vmatprep.subr.bf16.mxu0 0
    %841 = vmatpush1.bf16.msra.mxu0 %v671
    %842 = vmatprep.subr.bf16.mxu0 0
    %843 = vmatpush1.bf16.msra.mxu0 %v672
    %844 = vmatprep.subr.bf16.mxu0 0
    %845 = vmatpush1.bf16.msra.mxu0 %v673
    %846 = vmatprep.subr.bf16.mxu0 0
    %847 = vmatpush1.bf16.msra.mxu0 %v674
    %848 = vmatprep.subr.bf16.mxu0 0
    %849 = vmatpush1.bf16.msra.mxu0 %v675
    %850 = vmatprep.subr.bf16.mxu0 0
    %851 = vmatpush1.bf16.msra.mxu0 %v676
    %852 = vmatprep.subr.bf16.mxu0 0
    %853 = vmatpush1.bf16.msra.mxu0 %v677
    %854 = vmatprep.subr.bf16.mxu0 0
    %855 = vmatpush1.bf16.msra.mxu0 0
    %856 = vmatprep.subr.bf16.mxu0 0
    %857 = vmatpush1.bf16.msra.mxu0 0
    %858 = vmatprep.subr.bf16.mxu0 0
    %859 = vmatpush1.bf16.msra.mxu0 0
    %860 = vmatprep.subr.bf16.mxu0 0
    %861 = vmatpush1.bf16.msra.mxu0 0
    %862 = vmatprep.subr.bf16.mxu0 0
    %863 = vmatpush1.bf16.msra.mxu0 0
    %864 = vmatprep.subr.bf16.mxu0 0
    %865 = vmatpush1.bf16.msra.mxu0 0
    %866 = vmatprep.subr.bf16.mxu0 0
    %867 = vmatpush1.bf16.msra.mxu0 0
    %868 = vmatprep.subr.bf16.mxu0 0
    %869 = vmatpush1.bf16.msra.mxu0 0
    %870 = vmatprep.mubr.bf16.mxu0 0
    %871 = vmatmul.mubr.bf16.gmra.mrb[0].mxu0 %v822
    %v872 = vpop.f32.mrb[0].mxu0
    %v873 = vadd.f32 %v713, %v872
    %v874 = vpop.f32.mrb[0].mxu0
    %v875 = vpop.f32.mrb[0].mxu0
    %v876 = vadd.f32 %v718, %v875
    %v877 = vpop.f32.mrb[0].mxu0
    %878 = vmatprep.mubr.bf16.mxu0 0
    %879 = vmatmul.mubr.bf16.gmra.mrb[0].mxu0 %v823
    %v880 = vpop.f32.mrb[0].mxu0
    %v881 = vadd.f32 %v723, %v880
    %v882 = vpop.f32.mrb[0].mxu0
    %v883 = vpop.f32.mrb[0].mxu0
    %v884 = vadd.f32 %v728, %v883
    %v885 = vpop.f32.mrb[0].mxu0
    %886 = vmatprep.mubr.bf16.mxu0 0
    %887 = vmatmul.mubr.bf16.gmra.mrb[0].mxu0 %v824
    %v888 = vpop.f32.mrb[0].mxu0
    %v889 = vadd.f32 %v733, %v888
    %v890 = vpop.f32.mrb[0].mxu0
    %v891 = vpop.f32.mrb[0].mxu0
    %v892 = vadd.f32 %v738, %v891
    %v893 = vpop.f32.mrb[0].mxu0
    %894 = vmatprep.mubr.bf16.mxu0 0
    %895 = vmatmul.mubr.bf16.gmra.mrb[0].mxu0 %v825
    %v896 = vpop.f32.mrb[0].mxu0
    %v897 = vadd.f32 %v743, %v896
    %v898 = vpop.f32.mrb[0].mxu0
    %v899 = vpop.f32.mrb[0].mxu0
    %v900 = vadd.f32 %v748, %v899
    %v901 = vpop.f32.mrb[0].mxu0
    %902 = vmatprep.mubr.bf16.mxu0 0
    %903 = vmatmul.mubr.bf16.gmra.mrb[0].mxu0 %v826
    %v904 = vpop.f32.mrb[0].mxu0
    %v905 = vadd.f32 %v753, %v904
    %v906 = vpop.f32.mrb[0].mxu0
    %v907 = vpop.f32.mrb[0].mxu0
    %v908 = vadd.f32 %v758, %v907
    %v909 = vpop.f32.mrb[0].mxu0
    %910 = vmatprep.mubr.bf16.mxu0 0
    %911 = vmatmul.mubr.bf16.gmra.mrb[0].mxu0 %v827
    %v912 = vpop.f32.mrb[0].mxu0
    %v913 = vadd.f32 %v763, %v912
    %v914 = vpop.f32.mrb[0].mxu0
    %v915 = vpop.f32.mrb[0].mxu0
    %v916 = vadd.f32 %v768, %v915
    %v917 = vpop.f32.mrb[0].mxu0
    %918 = vmatprep.mubr.bf16.mxu0 0
    %919 = vmatmul.mubr.bf16.gmra.mrb[0].mxu0 %v828
    %v920 = vpop.f32.mrb[0].mxu0
    %v921 = vadd.f32 %v773, %v920
    %v922 = vpop.f32.mrb[0].mxu0
    %v923 = vpop.f32.mrb[0].mxu0
    %v924 = vadd.f32 %v778, %v923
    %v925 = vpop.f32.mrb[0].mxu0
    %926 = vmatprep.mubr.bf16.mxu0 0
    %927 = vmatmul.mubr.bf16.gmra.mrb[0].mxu0 %v829
    %v928 = vpop.f32.mrb[0].mxu0
    %v929 = vadd.f32 %v783, %v928
    %v930 = vpop.f32.mrb[0].mxu0
    %v931 = vpop.f32.mrb[0].mxu0
    %v932 = vadd.f32 %v788, %v931
    %v933 = vpop.f32.mrb[0].mxu0
    %934 = vdwg.mxu0
    %v935 = vmax.f32 %v873, 0.0
    %v936 = vmax.f32 %v876, 0.0
    %v937 = vmax.f32 %v881, 0.0
    %v938 = vmax.f32 %v884, 0.0
    %v939 = vmax.f32 %v889, 0.0
    %v940 = vmax.f32 %v892, 0.0
    %v941 = vmax.f32 %v897, 0.0
    %v942 = vmax.f32 %v900, 0.0
    %v943 = vmax.f32 %v905, 0.0
    %v944 = vmax.f32 %v908, 0.0
    %v945 = vmax.f32 %v913, 0.0
    %v946 = vmax.f32 %v916, 0.0
    %v947 = vmax.f32 %v921, 0.0
    %v948 = vmax.f32 %v924, 0.0
    %v949 = vmax.f32 %v929, 0.0
    %v950 = vmax.f32 %v932, 0.0
    %v951 = vpack.c.bf16 %v936, %v935
    %v952 = vpack.c.bf16 %v938, %v937
    %v953 = vpack.c.bf16 %v940, %v939
    %v954 = vpack.c.bf16 %v942, %v941
    %v955 = vpack.c.bf16 %v944, %v943
    %v956 = vpack.c.bf16 %v946, %v945
    %v957 = vpack.c.bf16 %v948, %v947
    %v958 = vpack.c.bf16 %v950, %v949
    %v959 = vld [vmem:[%s7] sm:$0xf]
    %v960 = vld [vmem:[%s7 + $0x4] sm:$0xf]
    %v961 = vld [vmem:[%s7 + $0x8] sm:$0xf]
    %v962 = vld [vmem:[%s7 + $0xc] sm:$0xf]
    %v963 = vld [vmem:[%s7 + $0x10] sm:$0xf]
    %v964 = vld [vmem:[%s7 + $0x14] sm:$0xf]
    %v965 = vld [vmem:[%s7 + $0x18] sm:$0xf]
    %v966 = vld [vmem:[%s7 + $0x1c] sm:$0xf]
    %v967 = vld [vmem:[%s7 + $0x20] sm:$0xf]
    %v968 = vld [vmem:[%s7 + $0x24] sm:$0xf]
    %v969 = vld [vmem:[%s7 + $0x28] sm:$0xf]
    %v970 = vld [vmem:[%s7 + $0x2c] sm:$0xf]
    %v971 = vld [vmem:[%s7 + $0x30] sm:$0xf]
    %v972 = vld [vmem:[%s7 + $0x34] sm:$0xf]
    %v973 = vld [vmem:[%s7 + $0x38] sm:$0xf]
    %v974 = vld [vmem:[%s7 + $0x3c] sm:$0xf]
    %v975 = vld [vmem:[%s8] sm:$0xff]
    %v976 = vld [vmem:[%s8 + $0x8] sm:$0xff]
    %v977 = vld [vmem:[%s8 + $0x10] sm:$0xff]
    %v978 = vld [vmem:[%s8 + $0x18] sm:$0xff]
    %v979 = vld [vmem:[%s8 + $0x20] sm:$0xff]
    %v980 = vld [vmem:[%s8 + $0x28] sm:$0xff]
    %v981 = vld [vmem:[%s8 + $0x30] sm:$0xff]
    %v982 = vld [vmem:[%s8 + $0x38] sm:$0xff]
    %v983 = vld [vmem:[%s8 + $0x40] sm:$0xff]
    %v984 = vld [vmem:[%s8 + $0x48] sm:$0xff]
    %v985 = vld [vmem:[%s8 + $0x50] sm:$0xff]
    %v986 = vld [vmem:[%s8 + $0x58] sm:$0xff]
    %v987 = vld [vmem:[%s8 + $0x60] sm:$0xff]
    %v988 = vld [vmem:[%s8 + $0x68] sm:$0xff]
    %v989 = vld [vmem:[%s8 + $0x70] sm:$0xff]
    %v990 = vld [vmem:[%s8 + $0x78] sm:$0xff]
    %992 = vset.pattern.permute.xlu0 0
    %993 = vperm.xlu0 %992, %v975
    %v994 = vpop.permute.xlu0 %993
    %997 = vset.pattern.permute.xlu0 0
    %998 = vperm.xlu0 %997, %v976
    %v999 = vpop.permute.xlu0 %998
    %1002 = vset.pattern.permute.xlu0 0
    %1003 = vperm.xlu0 %1002, %v977
    %v1004 = vpop.permute.xlu0 %1003
    %1007 = vset.pattern.permute.xlu0 0
    %1008 = vperm.xlu0 %1007, %v978
    %v1009 = vpop.permute.xlu0 %1008
    %1012 = vset.pattern.permute.xlu0 0
    %1013 = vperm.xlu0 %1012, %v979
    %v1014 = vpop.permute.xlu0 %1013
    %1017 = vset.pattern.permute.xlu0 0
    %1018 = vperm.xlu0 %1017, %v980
    %v1019 = vpop.permute.xlu0 %1018
    %1022 = vset.pattern.permute.xlu0 0
    %1023 = vperm.xlu0 %1022, %v981
    %v1024 = vpop.permute.xlu0 %1023
    %1027 = vset.pattern.permute.xlu0 0
    %1028 = vperm.xlu0 %1027, %v982
    %v1029 = vpop.permute.xlu0 %1028
    %1032 = vset.pattern.permute.xlu0 0
    %1033 = vperm.xlu0 %1032, %v983
    %v1034 = vpop.permute.xlu0 %1033
    %1037 = vset.pattern.permute.xlu0 0
    %1038 = vperm.xlu0 %1037, %v984
    %v1039 = vpop.permute.xlu0 %1038
    %1042 = vset.pattern.permute.xlu0 0
    %1043 = vperm.xlu0 %1042, %v985
    %v1044 = vpop.permute.xlu0 %1043
    %1047 = vset.pattern.permute.xlu0 0
    %1048 = vperm.xlu0 %1047, %v986
    %v1049 = vpop.permute.xlu0 %1048
    %1052 = vset.pattern.permute.xlu0 0
    %1053 = vperm.xlu0 %1052, %v987
    %v1054 = vpop.permute.xlu0 %1053
    %1057 = vset.pattern.permute.xlu0 0
    %1058 = vperm.xlu0 %1057, %v988
    %v1059 = vpop.permute.xlu0 %1058
    %1062 = vset.pattern.permute.xlu0 0
    %1063 = vperm.xlu0 %1062, %v989
    %v1064 = vpop.permute.xlu0 %1063
    %1067 = vset.pattern.permute.xlu0 0
    %1068 = vperm.xlu0 %1067, %v990
    %v1069 = vpop.permute.xlu0 %1068
    %v1087 = vunpack.c.l.b16 %v959
    %v1088 = vunpack.c.l.b16 %v960
    %v1089 = vunpack.c.l.b16 %v961
    %v1090 = vunpack.c.l.b16 %v962
    %v1091 = vunpack.c.l.b16 %v963
    %v1092 = vunpack.c.l.b16 %v964
    %v1093 = vunpack.c.l.b16 %v965
    %v1094 = vunpack.c.l.b16 %v966
    %v1095 = vunpack.c.l.b16 %v967
    %v1096 = vunpack.c.l.b16 %v968
    %v1097 = vunpack.c.l.b16 %v969
    %v1098 = vunpack.c.l.b16 %v970
    %v1099 = vunpack.c.l.b16 %v971
    %v1100 = vunpack.c.l.b16 %v972
    %v1101 = vunpack.c.l.b16 %v973
    %v1102 = vunpack.c.l.b16 %v974
    %v1103 = vpack.c.b16 %v1088, %v1087
    %v1104 = vpack.c.b16 %v1090, %v1089
    %v1105 = vpack.c.b16 %v1092, %v1091
    %v1106 = vpack.c.b16 %v1094, %v1093
    %v1107 = vpack.c.b16 %v1096, %v1095
    %v1108 = vpack.c.b16 %v1098, %v1097
    %v1109 = vpack.c.b16 %v1100, %v1099
    %v1110 = vpack.c.b16 %v1102, %v1101
    %1119 = vmatprep.subr.bf16.mxu0 0
    %1120 = vmatpush1.bf16.msra.mxu0 %v951
    %1121 = vmatprep.subr.bf16.mxu0 0
    %1122 = vmatpush1.bf16.msra.mxu0 %v952
    %1123 = vmatprep.subr.bf16.mxu0 0
    %1124 = vmatpush1.bf16.msra.mxu0 %v953
    %1125 = vmatprep.subr.bf16.mxu0 0
    %1126 = vmatpush1.bf16.msra.mxu0 %v954
    %1127 = vmatprep.subr.bf16.mxu0 0
    %1128 = vmatpush1.bf16.msra.mxu0 %v955
    %1129 = vmatprep.subr.bf16.mxu0 0
    %1130 = vmatpush1.bf16.msra.mxu0 %v956
    %1131 = vmatprep.subr.bf16.mxu0 0
    %1132 = vmatpush1.bf16.msra.mxu0 %v957
    %1133 = vmatprep.subr.bf16.mxu0 0
    %1134 = vmatpush1.bf16.msra.mxu0 %v958
    %1135 = vmatprep.subr.bf16.mxu0 0
    %1136 = vmatpush1.bf16.msra.mxu0 0
    %1137 = vmatprep.subr.bf16.mxu0 0
    %1138 = vmatpush1.bf16.msra.mxu0 0
    %1139 = vmatprep.subr.bf16.mxu0 0
    %1140 = vmatpush1.bf16.msra.mxu0 0
    %1141 = vmatprep.subr.bf16.mxu0 0
    %1142 = vmatpush1.bf16.msra.mxu0 0
    %1143 = vmatprep.subr.bf16.mxu0 0
    %1144 = vmatpush1.bf16.msra.mxu0 0
    %1145 = vmatprep.subr.bf16.mxu0 0
    %1146 = vmatpush1.bf16.msra.mxu0 0
    %1147 = vmatprep.subr.bf16.mxu0 0
    %1148 = vmatpush1.bf16.msra.mxu0 0
    %1149 = vmatprep.subr.bf16.mxu0 0
    %1150 = vmatpush1.bf16.msra.mxu0 0
    %1151 = vmatprep.mubr.bf16.mxu0 0
    %1152 = vmatmul.mubr.bf16.gmra.mrb[0].mxu0 %v1103
    %v1153 = vpop.f32.mrb[0].mxu0
    %v1154 = vadd.f32 %v994, %v1153
    %v1155 = vpop.f32.mrb[0].mxu0
    %v1156 = vpop.f32.mrb[0].mxu0
    %v1157 = vadd.f32 %v999, %v1156
    %v1158 = vpop.f32.mrb[0].mxu0
    %1159 = vmatprep.mubr.bf16.mxu0 0
    %1160 = vmatmul.mubr.bf16.gmra.mrb[0].mxu0 %v1104
    %v1161 = vpop.f32.mrb[0].mxu0
    %v1162 = vadd.f32 %v1004, %v1161
    %v1163 = vpop.f32.mrb[0].mxu0
    %v1164 = vpop.f32.mrb[0].mxu0
    %v1165 = vadd.f32 %v1009, %v1164
    %v1166 = vpop.f32.mrb[0].mxu0
    %1167 = vmatprep.mubr.bf16.mxu0 0
    %1168 = vmatmul.mubr.bf16.gmra.mrb[0].mxu0 %v1105
    %v1169 = vpop.f32.mrb[0].mxu0
    %v1170 = vadd.f32 %v1014, %v1169
    %v1171 = vpop.f32.mrb[0].mxu0
    %v1172 = vpop.f32.mrb[0].mxu0
    %v1173 = vadd.f32 %v1019, %v1172
    %v1174 = vpop.f32.mrb[0].mxu0
    %1175 = vmatprep.mubr.bf16.mxu0 0
    %1176 = vmatmul.mubr.bf16.gmra.mrb[0].mxu0 %v1106
    %v1177 = vpop.f32.mrb[0].mxu0
    %v1178 = vadd.f32 %v1024, %v1177
    %v1179 = vpop.f32.mrb[0].mxu0
    %v1180 = vpop.f32.mrb[0].mxu0
    %v1181 = vadd.f32 %v1029, %v1180
    %v1182 = vpop.f32.mrb[0].mxu0
    %1183 = vmatprep.mubr.bf16.mxu0 0
    %1184 = vmatmul.mubr.bf16.gmra.mrb[0].mxu0 %v1107
    %v1185 = vpop.f32.mrb[0].mxu0
    %v1186 = vadd.f32 %v1034, %v1185
    %v1187 = vpop.f32.mrb[0].mxu0
    %v1188 = vpop.f32.mrb[0].mxu0
    %v1189 = vadd.f32 %v1039, %v1188
    %v1190 = vpop.f32.mrb[0].mxu0
    %1191 = vmatprep.mubr.bf16.mxu0 0
    %1192 = vmatmul.mubr.bf16.gmra.mrb[0].mxu0 %v1108
    %v1193 = vpop.f32.mrb[0].mxu0
    %v1194 = vadd.f32 %v1044, %v1193
    %v1195 = vpop.f32.mrb[0].mxu0
    %v1196 = vpop.f32.mrb[0].mxu0
    %v1197 = vadd.f32 %v1049, %v1196
    %v1198 = vpop.f32.mrb[0].mxu0
    %1199 = vmatprep.mubr.bf16.mxu0 0
    %1200 = vmatmul.mubr.bf16.gmra.mrb[0].mxu0 %v1109
    %v1201 = vpop.f32.mrb[0].mxu0
    %v1202 = vadd.f32 %v1054, %v1201
    %v1203 = vpop.f32.mrb[0].mxu0
    %v1204 = vpop.f32.mrb[0].mxu0
    %v1205 = vadd.f32 %v1059, %v1204
    %v1206 = vpop.f32.mrb[0].mxu0
    %1207 = vmatprep.mubr.bf16.mxu0 0
    %1208 = vmatmul.mubr.bf16.gmra.mrb[0].mxu0 %v1110
    %v1209 = vpop.f32.mrb[0].mxu0
    %v1210 = vadd.f32 %v1064, %v1209
    %v1211 = vpop.f32.mrb[0].mxu0
    %v1212 = vpop.f32.mrb[0].mxu0
    %v1213 = vadd.f32 %v1069, %v1212
    %v1214 = vpop.f32.mrb[0].mxu0
    %1215 = vdwg.mxu0
    %v1216 = vmax.f32 %v1154, 0.0
    %v1217 = vmax.f32 %v1157, 0.0
    %v1218 = vmax.f32 %v1162, 0.0
    %v1219 = vmax.f32 %v1165, 0.0
    %v1220 = vmax.f32 %v1170, 0.0
    %v1221 = vmax.f32 %v1173, 0.0
    %v1222 = vmax.f32 %v1178, 0.0
    %v1223 = vmax.f32 %v1181, 0.0
    %v1224 = vmax.f32 %v1186, 0.0
    %v1225 = vmax.f32 %v1189, 0.0
    %v1226 = vmax.f32 %v1194, 0.0
    %v1227 = vmax.f32 %v1197, 0.0
    %v1228 = vmax.f32 %v1202, 0.0
    %v1229 = vmax.f32 %v1205, 0.0
    %v1230 = vmax.f32 %v1210, 0.0
    %v1231 = vmax.f32 %v1213, 0.0
    %v1232 = vpack.c.bf16 %v1217, %v1216
    %v1233 = vpack.c.bf16 %v1219, %v1218
    %v1234 = vpack.c.bf16 %v1221, %v1220
    %v1235 = vpack.c.bf16 %v1223, %v1222
    %v1236 = vpack.c.bf16 %v1225, %v1224
    %v1237 = vpack.c.bf16 %v1227, %v1226
    %v1238 = vpack.c.bf16 %v1229, %v1228
    %v1239 = vpack.c.bf16 %v1231, %v1230
    %v1240 = vld [vmem:[%s9] sm:$0xf]
    %v1241 = vld [vmem:[%s9 + $0x4] sm:$0xf]
    %v1242 = vld [vmem:[%s9 + $0x8] sm:$0xf]
    %v1243 = vld [vmem:[%s9 + $0xc] sm:$0xf]
    %v1244 = vld [vmem:[%s9 + $0x10] sm:$0xf]
    %v1245 = vld [vmem:[%s9 + $0x14] sm:$0xf]
    %v1246 = vld [vmem:[%s9 + $0x18] sm:$0xf]
    %v1247 = vld [vmem:[%s9 + $0x1c] sm:$0xf]
    %v1248 = vld [vmem:[%s9 + $0x20] sm:$0xf]
    %v1249 = vld [vmem:[%s9 + $0x24] sm:$0xf]
    %v1250 = vld [vmem:[%s9 + $0x28] sm:$0xf]
    %v1251 = vld [vmem:[%s9 + $0x2c] sm:$0xf]
    %v1252 = vld [vmem:[%s9 + $0x30] sm:$0xf]
    %v1253 = vld [vmem:[%s9 + $0x34] sm:$0xf]
    %v1254 = vld [vmem:[%s9 + $0x38] sm:$0xf]
    %v1255 = vld [vmem:[%s9 + $0x3c] sm:$0xf]
    %v1256 = vld [vmem:[%s10] sm:$0xff]
    %v1257 = vld [vmem:[%s10 + $0x8] sm:$0xff]
    %v1258 = vld [vmem:[%s10 + $0x10] sm:$0xff]
    %v1259 = vld [vmem:[%s10 + $0x18] sm:$0xff]
    %v1260 = vld [vmem:[%s10 + $0x20] sm:$0xff]
    %v1261 = vld [vmem:[%s10 + $0x28] sm:$0xff]
    %v1262 = vld [vmem:[%s10 + $0x30] sm:$0xff]
    %v1263 = vld [vmem:[%s10 + $0x38] sm:$0xff]
    %v1264 = vld [vmem:[%s10 + $0x40] sm:$0xff]
    %v1265 = vld [vmem:[%s10 + $0x48] sm:$0xff]
    %v1266 = vld [vmem:[%s10 + $0x50] sm:$0xff]
    %v1267 = vld [vmem:[%s10 + $0x58] sm:$0xff]
    %v1268 = vld [vmem:[%s10 + $0x60] sm:$0xff]
    %v1269 = vld [vmem:[%s10 + $0x68] sm:$0xff]
    %v1270 = vld [vmem:[%s10 + $0x70] sm:$0xff]
    %v1271 = vld [vmem:[%s10 + $0x78] sm:$0xff]
    %1273 = vset.pattern.permute.xlu0 0
    %1274 = vperm.xlu0 %1273, %v1256
    %v1275 = vpop.permute.xlu0 %1274
    %1278 = vset.pattern.permute.xlu0 0
    %1279 = vperm.xlu0 %1278, %v1257
    %v1280 = vpop.permute.xlu0 %1279
    %1283 = vset.pattern.permute.xlu0 0
    %1284 = vperm.xlu0 %1283, %v1258
    %v1285 = vpop.permute.xlu0 %1284
    %1288 = vset.pattern.permute.xlu0 0
    %1289 = vperm.xlu0 %1288, %v1259
    %v1290 = vpop.permute.xlu0 %1289
    %1293 = vset.pattern.permute.xlu0 0
    %1294 = vperm.xlu0 %1293, %v1260
    %v1295 = vpop.permute.xlu0 %1294
    %1298 = vset.pattern.permute.xlu0 0
    %1299 = vperm.xlu0 %1298, %v1261
    %v1300 = vpop.permute.xlu0 %1299
    %1303 = vset.pattern.permute.xlu0 0
    %1304 = vperm.xlu0 %1303, %v1262
    %v1305 = vpop.permute.xlu0 %1304
    %1308 = vset.pattern.permute.xlu0 0
    %1309 = vperm.xlu0 %1308, %v1263
    %v1310 = vpop.permute.xlu0 %1309
    %1313 = vset.pattern.permute.xlu0 0
    %1314 = vperm.xlu0 %1313, %v1264
    %v1315 = vpop.permute.xlu0 %1314
    %1318 = vset.pattern.permute.xlu0 0
    %1319 = vperm.xlu0 %1318, %v1265
    %v1320 = vpop.permute.xlu0 %1319
    %1323 = vset.pattern.permute.xlu0 0
    %1324 = vperm.xlu0 %1323, %v1266
    %v1325 = vpop.permute.xlu0 %1324
    %1328 = vset.pattern.permute.xlu0 0
    %1329 = vperm.xlu0 %1328, %v1267
    %v1330 = vpop.permute.xlu0 %1329
    %1333 = vset.pattern.permute.xlu0 0
    %1334 = vperm.xlu0 %1333, %v1268
    %v1335 = vpop.permute.xlu0 %1334
    %1338 = vset.pattern.permute.xlu0 0
    %1339 = vperm.xlu0 %1338, %v1269
    %v1340 = vpop.permute.xlu0 %1339
    %1343 = vset.pattern.permute.xlu0 0
    %1344 = vperm.xlu0 %1343, %v1270
    %v1345 = vpop.permute.xlu0 %1344
    %1348 = vset.pattern.permute.xlu0 0
    %1349 = vperm.xlu0 %1348, %v1271
    %v1350 = vpop.permute.xlu0 %1349
    %v1368 = vunpack.c.l.b16 %v1240
    %v1369 = vunpack.c.l.b16 %v1241
    %v1370 = vunpack.c.l.b16 %v1242
    %v1371 = vunpack.c.l.b16 %v1243
    %v1372 = vunpack.c.l.b16 %v1244
    %v1373 = vunpack.c.l.b16 %v1245
    %v1374 = vunpack.c.l.b16 %v1246
    %v1375 = vunpack.c.l.b16 %v1247
    %v1376 = vunpack.c.l.b16 %v1248
    %v1377 = vunpack.c.l.b16 %v1249
    %v1378 = vunpack.c.l.b16 %v1250
    %v1379 = vunpack.c.l.b16 %v1251
    %v1380 = vunpack.c.l.b16 %v1252
    %v1381 = vunpack.c.l.b16 %v1253
    %v1382 = vunpack.c.l.b16 %v1254
    %v1383 = vunpack.c.l.b16 %v1255
    %v1384 = vpack.c.b16 %v1369, %v1368
    %v1385 = vpack.c.b16 %v1371, %v1370
    %v1386 = vpack.c.b16 %v1373, %v1372
    %v1387 = vpack.c.b16 %v1375, %v1374
    %v1388 = vpack.c.b16 %v1377, %v1376
    %v1389 = vpack.c.b16 %v1379, %v1378
    %v1390 = vpack.c.b16 %v1381, %v1380
    %v1391 = vpack.c.b16 %v1383, %v1382
    %1400 = vmatprep.subr.bf16.mxu0 0
    %1401 = vmatpush1.bf16.msra.mxu0 %v1232
    %1402 = vmatprep.subr.bf16.mxu0 0
    %1403 = vmatpush1.bf16.msra.mxu0 %v1233
    %1404 = vmatprep.subr.bf16.mxu0 0
    %1405 = vmatpush1.bf16.msra.mxu0 %v1234
    %1406 = vmatprep.subr.bf16.mxu0 0
    %1407 = vmatpush1.bf16.msra.mxu0 %v1235
    %1408 = vmatprep.subr.bf16.mxu0 0
    %1409 = vmatpush1.bf16.msra.mxu0 %v1236
    %1410 = vmatprep.subr.bf16.mxu0 0
    %1411 = vmatpush1.bf16.msra.mxu0 %v1237
    %1412 = vmatprep.subr.bf16.mxu0 0
    %1413 = vmatpush1.bf16.msra.mxu0 %v1238
    %1414 = vmatprep.subr.bf16.mxu0 0
    %1415 = vmatpush1.bf16.msra.mxu0 %v1239
    %1416 = vmatprep.subr.bf16.mxu0 0
    %1417 = vmatpush1.bf16.msra.mxu0 0
    %1418 = vmatprep.subr.bf16.mxu0 0
    %1419 = vmatpush1.bf16.msra.mxu0 0
    %1420 = vmatprep.subr.bf16.mxu0 0
    %1421 = vmatpush1.bf16.msra.mxu0 0
    %1422 = vmatprep.subr.bf16.mxu0 0
    %1423 = vmatpush1.bf16.msra.mxu0 0
    %1424 = vmatprep.subr.bf16.mxu0 0
    %1425 = vmatpush1.bf16.msra.mxu0 0
    %1426 = vmatprep.subr.bf16.mxu0 0
    %1427 = vmatpush1.bf16.msra.mxu0 0
    %1428 = vmatprep.subr.bf16.mxu0 0
    %1429 = vmatpush1.bf16.msra.mxu0 0
    %1430 = vmatprep.subr.bf16.mxu0 0
    %1431 = vmatpush1.bf16.msra.mxu0 0
    %1432 = vmatprep.mubr.bf16.mxu0 0
    %1433 = vmatmul.mubr.bf16.gmra.mrb[0].mxu0 %v1384
    %v1434 = vpop.f32.mrb[0].mxu0
    %v1435 = vadd.f32 %v1275, %v1434
    %v1436 = vpop.f32.mrb[0].mxu0
    %v1437 = vpop.f32.mrb[0].mxu0
    %v1438 = vadd.f32 %v1280, %v1437
    %v1439 = vpop.f32.mrb[0].mxu0
    %1440 = vmatprep.mubr.bf16.mxu0 0
    %1441 = vmatmul.mubr.bf16.gmra.mrb[0].mxu0 %v1385
    %v1442 = vpop.f32.mrb[0].mxu0
    %v1443 = vadd.f32 %v1285, %v1442
    %v1444 = vpop.f32.mrb[0].mxu0
    %v1445 = vpop.f32.mrb[0].mxu0
    %v1446 = vadd.f32 %v1290, %v1445
    %v1447 = vpop.f32.mrb[0].mxu0
    %1448 = vmatprep.mubr.bf16.mxu0 0
    %1449 = vmatmul.mubr.bf16.gmra.mrb[0].mxu0 %v1386
    %v1450 = vpop.f32.mrb[0].mxu0
    %v1451 = vadd.f32 %v1295, %v1450
    %v1452 = vpop.f32.mrb[0].mxu0
    %v1453 = vpop.f32.mrb[0].mxu0
    %v1454 = vadd.f32 %v1300, %v1453
    %v1455 = vpop.f32.mrb[0].mxu0
    %1456 = vmatprep.mubr.bf16.mxu0 0
    %1457 = vmatmul.mubr.bf16.gmra.mrb[0].mxu0 %v1387
    %v1458 = vpop.f32.mrb[0].mxu0
    %v1459 = vadd.f32 %v1305, %v1458
    %v1460 = vpop.f32.mrb[0].mxu0
    %v1461 = vpop.f32.mrb[0].mxu0
    %v1462 = vadd.f32 %v1310, %v1461
    %v1463 = vpop.f32.mrb[0].mxu0
    %1464 = vmatprep.mubr.bf16.mxu0 0
    %1465 = vmatmul.mubr.bf16.gmra.mrb[0].mxu0 %v1388
    %v1466 = vpop.f32.mrb[0].mxu0
    %v1467 = vadd.f32 %v1315, %v1466
    %v1468 = vpop.f32.mrb[0].mxu0
    %v1469 = vpop.f32.mrb[0].mxu0
    %v1470 = vadd.f32 %v1320, %v1469
    %v1471 = vpop.f32.mrb[0].mxu0
    %1472 = vmatprep.mubr.bf16.mxu0 0
    %1473 = vmatmul.mubr.bf16.gmra.mrb[0].mxu0 %v1389
    %v1474 = vpop.f32.mrb[0].mxu0
    %v1475 = vadd.f32 %v1325, %v1474
    %v1476 = vpop.f32.mrb[0].mxu0
    %v1477 = vpop.f32.mrb[0].mxu0
    %v1478 = vadd.f32 %v1330, %v1477
    %v1479 = vpop.f32.mrb[0].mxu0
    %1480 = vmatprep.mubr.bf16.mxu0 0
    %1481 = vmatmul.mubr.bf16.gmra.mrb[0].mxu0 %v1390
    %v1482 = vpop.f32.mrb[0].mxu0
    %v1483 = vadd.f32 %v1335, %v1482
    %v1484 = vpop.f32.mrb[0].mxu0
    %v1485 = vpop.f32.mrb[0].mxu0
    %v1486 = vadd.f32 %v1340, %v1485
    %v1487 = vpop.f32.mrb[0].mxu0
    %1488 = vmatprep.mubr.bf16.mxu0 0
    %1489 = vmatmul.mubr.bf16.gmra.mrb[0].mxu0 %v1391
    %v1490 = vpop.f32.mrb[0].mxu0
    %v1491 = vadd.f32 %v1345, %v1490
    %v1492 = vpop.f32.mrb[0].mxu0
    %v1493 = vpop.f32.mrb[0].mxu0
    %v1494 = vadd.f32 %v1350, %v1493
    %v1495 = vpop.f32.mrb[0].mxu0
    %1496 = vdwg.mxu0
    %v1497 = vmax.f32 %v1435, 0.0
    %v1498 = vmax.f32 %v1438, 0.0
    %v1499 = vmax.f32 %v1443, 0.0
    %v1500 = vmax.f32 %v1446, 0.0
    %v1501 = vmax.f32 %v1451, 0.0
    %v1502 = vmax.f32 %v1454, 0.0
    %v1503 = vmax.f32 %v1459, 0.0
    %v1504 = vmax.f32 %v1462, 0.0
    %v1505 = vmax.f32 %v1467, 0.0
    %v1506 = vmax.f32 %v1470, 0.0
    %v1507 = vmax.f32 %v1475, 0.0
    %v1508 = vmax.f32 %v1478, 0.0
    %v1509 = vmax.f32 %v1483, 0.0
    %v1510 = vmax.f32 %v1486, 0.0
    %v1511 = vmax.f32 %v1491, 0.0
    %v1512 = vmax.f32 %v1494, 0.0
    %v1513 = vpack.c.bf16 %v1498, %v1497
    %v1514 = vpack.c.bf16 %v1500, %v1499
    %v1515 = vpack.c.bf16 %v1502, %v1501
    %v1516 = vpack.c.bf16 %v1504, %v1503
    %v1517 = vpack.c.bf16 %v1506, %v1505
    %v1518 = vpack.c.bf16 %v1508, %v1507
    %v1519 = vpack.c.bf16 %v1510, %v1509
    %v1520 = vpack.c.bf16 %v1512, %v1511
    %v1521 = vld [vmem:[%s11] sm:$0xf]
    %v1522 = vld [vmem:[%s11 + $0x4] sm:$0xf]
    %v1523 = vld [vmem:[%s11 + $0x8] sm:$0xf]
    %v1524 = vld [vmem:[%s11 + $0xc] sm:$0xf]
    %v1525 = vld [vmem:[%s11 + $0x10] sm:$0xf]
    %v1526 = vld [vmem:[%s11 + $0x14] sm:$0xf]
    %v1527 = vld [vmem:[%s11 + $0x18] sm:$0xf]
    %v1528 = vld [vmem:[%s11 + $0x1c] sm:$0xf]
    %v1529 = vld [vmem:[%s11 + $0x20] sm:$0xf]
    %v1530 = vld [vmem:[%s11 + $0x24] sm:$0xf]
    %v1531 = vld [vmem:[%s11 + $0x28] sm:$0xf]
    %v1532 = vld [vmem:[%s11 + $0x2c] sm:$0xf]
    %v1533 = vld [vmem:[%s11 + $0x30] sm:$0xf]
    %v1534 = vld [vmem:[%s11 + $0x34] sm:$0xf]
    %v1535 = vld [vmem:[%s11 + $0x38] sm:$0xf]
    %v1536 = vld [vmem:[%s11 + $0x3c] sm:$0xf]
    %v1537 = vld [vmem:[%s12] sm:$0xff]
    %v1538 = vld [vmem:[%s12 + $0x8] sm:$0xff]
    %v1539 = vld [vmem:[%s12 + $0x10] sm:$0xff]
    %v1540 = vld [vmem:[%s12 + $0x18] sm:$0xff]
    %v1541 = vld [vmem:[%s12 + $0x20] sm:$0xff]
    %v1542 = vld [vmem:[%s12 + $0x28] sm:$0xff]
    %v1543 = vld [vmem:[%s12 + $0x30] sm:$0xff]
    %v1544 = vld [vmem:[%s12 + $0x38] sm:$0xff]
    %v1545 = vld [vmem:[%s12 + $0x40] sm:$0xff]
    %v1546 = vld [vmem:[%s12 + $0x48] sm:$0xff]
    %v1547 = vld [vmem:[%s12 + $0x50] sm:$0xff]
    %v1548 = vld [vmem:[%s12 + $0x58] sm:$0xff]
    %v1549 = vld [vmem:[%s12 + $0x60] sm:$0xff]
    %v1550 = vld [vmem:[%s12 + $0x68] sm:$0xff]
    %v1551 = vld [vmem:[%s12 + $0x70] sm:$0xff]
    %v1552 = vld [vmem:[%s12 + $0x78] sm:$0xff]
    %1554 = vset.pattern.permute.xlu0 0
    %1555 = vperm.xlu0 %1554, %v1537
    %v1556 = vpop.permute.xlu0 %1555
    %1559 = vset.pattern.permute.xlu0 0
    %1560 = vperm.xlu0 %1559, %v1538
    %v1561 = vpop.permute.xlu0 %1560
    %1564 = vset.pattern.permute.xlu0 0
    %1565 = vperm.xlu0 %1564, %v1539
    %v1566 = vpop.permute.xlu0 %1565
    %1569 = vset.pattern.permute.xlu0 0
    %1570 = vperm.xlu0 %1569, %v1540
    %v1571 = vpop.permute.xlu0 %1570
    %1574 = vset.pattern.permute.xlu0 0
    %1575 = vperm.xlu0 %1574, %v1541
    %v1576 = vpop.permute.xlu0 %1575
    %1579 = vset.pattern.permute.xlu0 0
    %1580 = vperm.xlu0 %1579, %v1542
    %v1581 = vpop.permute.xlu0 %1580
    %1584 = vset.pattern.permute.xlu0 0
    %1585 = vperm.xlu0 %1584, %v1543
    %v1586 = vpop.permute.xlu0 %1585
    %1589 = vset.pattern.permute.xlu0 0
    %1590 = vperm.xlu0 %1589, %v1544
    %v1591 = vpop.permute.xlu0 %1590
    %1594 = vset.pattern.permute.xlu0 0
    %1595 = vperm.xlu0 %1594, %v1545
    %v1596 = vpop.permute.xlu0 %1595
    %1599 = vset.pattern.permute.xlu0 0
    %1600 = vperm.xlu0 %1599, %v1546
    %v1601 = vpop.permute.xlu0 %1600
    %1604 = vset.pattern.permute.xlu0 0
    %1605 = vperm.xlu0 %1604, %v1547
    %v1606 = vpop.permute.xlu0 %1605
    %1609 = vset.pattern.permute.xlu0 0
    %1610 = vperm.xlu0 %1609, %v1548
    %v1611 = vpop.permute.xlu0 %1610
    %1614 = vset.pattern.permute.xlu0 0
    %1615 = vperm.xlu0 %1614, %v1549
    %v1616 = vpop.permute.xlu0 %1615
    %1619 = vset.pattern.permute.xlu0 0
    %1620 = vperm.xlu0 %1619, %v1550
    %v1621 = vpop.permute.xlu0 %1620
    %1624 = vset.pattern.permute.xlu0 0
    %1625 = vperm.xlu0 %1624, %v1551
    %v1626 = vpop.permute.xlu0 %1625
    %1629 = vset.pattern.permute.xlu0 0
    %1630 = vperm.xlu0 %1629, %v1552
    %v1631 = vpop.permute.xlu0 %1630
    %v1649 = vunpack.c.l.b16 %v1521
    %v1650 = vunpack.c.l.b16 %v1522
    %v1651 = vunpack.c.l.b16 %v1523
    %v1652 = vunpack.c.l.b16 %v1524
    %v1653 = vunpack.c.l.b16 %v1525
    %v1654 = vunpack.c.l.b16 %v1526
    %v1655 = vunpack.c.l.b16 %v1527
    %v1656 = vunpack.c.l.b16 %v1528
    %v1657 = vunpack.c.l.b16 %v1529
    %v1658 = vunpack.c.l.b16 %v1530
    %v1659 = vunpack.c.l.b16 %v1531
    %v1660 = vunpack.c.l.b16 %v1532
    %v1661 = vunpack.c.l.b16 %v1533
    %v1662 = vunpack.c.l.b16 %v1534
    %v1663 = vunpack.c.l.b16 %v1535
    %v1664 = vunpack.c.l.b16 %v1536
    %v1665 = vpack.c.b16 %v1650, %v1649
    %v1666 = vpack.c.b16 %v1652, %v1651
    %v1667 = vpack.c.b16 %v1654, %v1653
    %v1668 = vpack.c.b16 %v1656, %v1655
    %v1669 = vpack.c.b16 %v1658, %v1657
    %v1670 = vpack.c.b16 %v1660, %v1659
    %v1671 = vpack.c.b16 %v1662, %v1661
    %v1672 = vpack.c.b16 %v1664, %v1663
    %1681 = vmatprep.subr.bf16.mxu0 0
    %1682 = vmatpush1.bf16.msra.mxu0 %v1513
    %1683 = vmatprep.subr.bf16.mxu0 0
    %1684 = vmatpush1.bf16.msra.mxu0 %v1514
    %1685 = vmatprep.subr.bf16.mxu0 0
    %1686 = vmatpush1.bf16.msra.mxu0 %v1515
    %1687 = vmatprep.subr.bf16.mxu0 0
    %1688 = vmatpush1.bf16.msra.mxu0 %v1516
    %1689 = vmatprep.subr.bf16.mxu0 0
    %1690 = vmatpush1.bf16.msra.mxu0 %v1517
    %1691 = vmatprep.subr.bf16.mxu0 0
    %1692 = vmatpush1.bf16.msra.mxu0 %v1518
    %1693 = vmatprep.subr.bf16.mxu0 0
    %1694 = vmatpush1.bf16.msra.mxu0 %v1519
    %1695 = vmatprep.subr.bf16.mxu0 0
    %1696 = vmatpush1.bf16.msra.mxu0 %v1520
    %1697 = vmatprep.subr.bf16.mxu0 0
    %1698 = vmatpush1.bf16.msra.mxu0 0
    %1699 = vmatprep.subr.bf16.mxu0 0
    %1700 = vmatpush1.bf16.msra.mxu0 0
    %1701 = vmatprep.subr.bf16.mxu0 0
    %1702 = vmatpush1.bf16.msra.mxu0 0
    %1703 = vmatprep.subr.bf16.mxu0 0
    %1704 = vmatpush1.bf16.msra.mxu0 0
    %1705 = vmatprep.subr.bf16.mxu0 0
    %1706 = vmatpush1.bf16.msra.mxu0 0
    %1707 = vmatprep.subr.bf16.mxu0 0
    %1708 = vmatpush1.bf16.msra.mxu0 0
    %1709 = vmatprep.subr.bf16.mxu0 0
    %1710 = vmatpush1.bf16.msra.mxu0 0
    %1711 = vmatprep.subr.bf16.mxu0 0
    %1712 = vmatpush1.bf16.msra.mxu0 0
    %1713 = vmatprep.mubr.bf16.mxu0 0
    %1714 = vmatmul.mubr.bf16.gmra.mrb[0].mxu0 %v1665
    %v1715 = vpop.f32.mrb[0].mxu0
    %v1716 = vadd.f32 %v1556, %v1715
    %v1717 = vpop.f32.mrb[0].mxu0
    %v1718 = vpop.f32.mrb[0].mxu0
    %v1719 = vadd.f32 %v1561, %v1718
    %v1720 = vpop.f32.mrb[0].mxu0
    %1721 = vmatprep.mubr.bf16.mxu0 0
    %1722 = vmatmul.mubr.bf16.gmra.mrb[0].mxu0 %v1666
    %v1723 = vpop.f32.mrb[0].mxu0
    %v1724 = vadd.f32 %v1566, %v1723
    %v1725 = vpop.f32.mrb[0].mxu0
    %v1726 = vpop.f32.mrb[0].mxu0
    %v1727 = vadd.f32 %v1571, %v1726
    %v1728 = vpop.f32.mrb[0].mxu0
    %1729 = vmatprep.mubr.bf16.mxu0 0
    %1730 = vmatmul.mubr.bf16.gmra.mrb[0].mxu0 %v1667
    %v1731 = vpop.f32.mrb[0].mxu0
    %v1732 = vadd.f32 %v1576, %v1731
    %v1733 = vpop.f32.mrb[0].mxu0
    %v1734 = vpop.f32.mrb[0].mxu0
    %v1735 = vadd.f32 %v1581, %v1734
    %v1736 = vpop.f32.mrb[0].mxu0
    %1737 = vmatprep.mubr.bf16.mxu0 0
    %1738 = vmatmul.mubr.bf16.gmra.mrb[0].mxu0 %v1668
    %v1739 = vpop.f32.mrb[0].mxu0
    %v1740 = vadd.f32 %v1586, %v1739
    %v1741 = vpop.f32.mrb[0].mxu0
    %v1742 = vpop.f32.mrb[0].mxu0
    %v1743 = vadd.f32 %v1591, %v1742
    %v1744 = vpop.f32.mrb[0].mxu0
    %1745 = vmatprep.mubr.bf16.mxu0 0
    %1746 = vmatmul.mubr.bf16.gmra.mrb[0].mxu0 %v1669
    %v1747 = vpop.f32.mrb[0].mxu0
    %v1748 = vadd.f32 %v1596, %v1747
    %v1749 = vpop.f32.mrb[0].mxu0
    %v1750 = vpop.f32.mrb[0].mxu0
    %v1751 = vadd.f32 %v1601, %v1750
    %v1752 = vpop.f32.mrb[0].mxu0
    %1753 = vmatprep.mubr.bf16.mxu0 0
    %1754 = vmatmul.mubr.bf16.gmra.mrb[0].mxu0 %v1670
    %v1755 = vpop.f32.mrb[0].mxu0
    %v1756 = vadd.f32 %v1606, %v1755
    %v1757 = vpop.f32.mrb[0].mxu0
    %v1758 = vpop.f32.mrb[0].mxu0
    %v1759 = vadd.f32 %v1611, %v1758
    %v1760 = vpop.f32.mrb[0].mxu0
    %1761 = vmatprep.mubr.bf16.mxu0 0
    %1762 = vmatmul.mubr.bf16.gmra.mrb[0].mxu0 %v1671
    %v1763 = vpop.f32.mrb[0].mxu0
    %v1764 = vadd.f32 %v1616, %v1763
    %v1765 = vpop.f32.mrb[0].mxu0
    %v1766 = vpop.f32.mrb[0].mxu0
    %v1767 = vadd.f32 %v1621, %v1766
    %v1768 = vpop.f32.mrb[0].mxu0
    %1769 = vmatprep.mubr.bf16.mxu0 0
    %1770 = vmatmul.mubr.bf16.gmra.mrb[0].mxu0 %v1672
    %v1771 = vpop.f32.mrb[0].mxu0
    %v1772 = vadd.f32 %v1626, %v1771
    %v1773 = vpop.f32.mrb[0].mxu0
    %v1774 = vpop.f32.mrb[0].mxu0
    %v1775 = vadd.f32 %v1631, %v1774
    %v1776 = vpop.f32.mrb[0].mxu0
    %1777 = vdwg.mxu0
    %v1778 = vmax.f32 %v1716, 0.0
    %v1779 = vmax.f32 %v1719, 0.0
    %v1780 = vmax.f32 %v1724, 0.0
    %v1781 = vmax.f32 %v1727, 0.0
    %v1782 = vmax.f32 %v1732, 0.0
    %v1783 = vmax.f32 %v1735, 0.0
    %v1784 = vmax.f32 %v1740, 0.0
    %v1785 = vmax.f32 %v1743, 0.0
    %v1786 = vmax.f32 %v1748, 0.0
    %v1787 = vmax.f32 %v1751, 0.0
    %v1788 = vmax.f32 %v1756, 0.0
    %v1789 = vmax.f32 %v1759, 0.0
    %v1790 = vmax.f32 %v1764, 0.0
    %v1791 = vmax.f32 %v1767, 0.0
    %v1792 = vmax.f32 %v1772, 0.0
    %v1793 = vmax.f32 %v1775, 0.0
    %v1794 = vpack.c.bf16 %v1779, %v1778
    %v1795 = vpack.c.bf16 %v1781, %v1780
    %v1796 = vpack.c.bf16 %v1783, %v1782
    %v1797 = vpack.c.bf16 %v1785, %v1784
    %v1798 = vpack.c.bf16 %v1787, %v1786
    %v1799 = vpack.c.bf16 %v1789, %v1788
    %v1800 = vpack.c.bf16 %v1791, %v1790
    %v1801 = vpack.c.bf16 %v1793, %v1792
    %v1802 = vld [vmem:[%s13] sm:$0xf]
    %v1803 = vld [vmem:[%s14] sm:$0xff]
    %1805 = vset.pattern.permute.xlu0 0
    %1806 = vperm.xlu0 %1805, %v1803
    %v1807 = vpop.permute.xlu0 %1806
    %1809 = vmatprep.subr.bf16.mxu0 0
    %1810 = vmatpush1.bf16.msra.mxu0 %v1794
    %1811 = vmatprep.subr.bf16.mxu0 0
    %1812 = vmatpush1.bf16.msra.mxu0 %v1795
    %1813 = vmatprep.subr.bf16.mxu0 0
    %1814 = vmatpush1.bf16.msra.mxu0 %v1796
    %1815 = vmatprep.subr.bf16.mxu0 0
    %1816 = vmatpush1.bf16.msra.mxu0 %v1797
    %1817 = vmatprep.subr.bf16.mxu0 0
    %1818 = vmatpush1.bf16.msra.mxu0 %v1798
    %1819 = vmatprep.subr.bf16.mxu0 0
    %1820 = vmatpush1.bf16.msra.mxu0 %v1799
    %1821 = vmatprep.subr.bf16.mxu0 0
    %1822 = vmatpush1.bf16.msra.mxu0 %v1800
    %1823 = vmatprep.subr.bf16.mxu0 0
    %1824 = vmatpush1.bf16.msra.mxu0 %v1801
    %1825 = vmatprep.subr.bf16.mxu0 0
    %1826 = vmatpush1.bf16.msra.mxu0 0
    %1827 = vmatprep.subr.bf16.mxu0 0
    %1828 = vmatpush1.bf16.msra.mxu0 0
    %1829 = vmatprep.subr.bf16.mxu0 0
    %1830 = vmatpush1.bf16.msra.mxu0 0
    %1831 = vmatprep.subr.bf16.mxu0 0
    %1832 = vmatpush1.bf16.msra.mxu0 0
    %1833 = vmatprep.subr.bf16.mxu0 0
    %1834 = vmatpush1.bf16.msra.mxu0 0
    %1835 = vmatprep.subr.bf16.mxu0 0
    %1836 = vmatpush1.bf16.msra.mxu0 0
    %1837 = vmatprep.subr.bf16.mxu0 0
    %1838 = vmatpush1.bf16.msra.mxu0 0
    %1839 = vmatprep.subr.bf16.mxu0 0
    %1840 = vmatpush1.bf16.msra.mxu0 0
    %1841 = vmatprep.mubr.bf16.mxu0 0
    %1842 = vmatmul.mubr.bf16.gmra.mrb[0].mxu0 %v1802
    %v1843 = vpop.f32.mrb[0].mxu0
    %v1844 = vadd.f32 %v1807, %v1843
    %v1845 = vpop.f32.mrb[0].mxu0
    %v1846 = vpop.f32.mrb[0].mxu0
    %v1847 = vpop.f32.mrb[0].mxu0
    %1848 = vdwg.mxu0
    %1849 = vst [vmem:[#allocation2] sm:$0xff] %v1844
    // Predicated region
    $region62: #{tpu_custom_call.1} parent=1 // pred_check
      _
    $region63: #{tpu_custom_call.1} parent=1 // pred_check_branch
      %1851 = sbr.rel (0) target = $region65
    $region64: #{tpu_custom_call.1} parent=1 // pred_region
      %s1853 = ssub.s32 128, 128
      %1854 = vsyncadd [#allocation3], %s1853
      %s1856 = sshll.u32 [#allocation2], 4
      %s1857 = int_to_ptr.vmem [resolvable:$true] %s1856
      %1859 = dma.vmem_to_hbm [thread:$0]  %s1857, 128, %s15, [#allocation3]
    $region65: #{tpu_custom_call.1} parent=1 // pred_fallthru
      _
    // Predicated region
    $region66: #{tpu_custom_call.1} parent=1 // pred_check
      _
    $region67: #{tpu_custom_call.1} parent=1 // pred_check_branch
      %1861 = sbr.rel (0) target = $region69
    $region68: #{tpu_custom_call.1} parent=1 // pred_region
      %1862 = dma.done [#allocation3], 128
    $region69: #{tpu_custom_call.1} parent=1 // pred_fallthru
      _
    %1863 = vsyncpa [#allocation3], 1

</llo_original>
